<compile_context>
chip_gen: v5e
topology: v5e:2x2
jax: 0.10.0
libtpu: 0.0.40
codegen_flags: <defaults>
</compile_context>

<pallas_src>
import functools

import jax
import jax.numpy as jnp
from jax.experimental import pallas as pl
from jax.experimental.pallas import tpu as pltpu

# ---------------- config (small, synthetic; mirrors the PyTorch module) ----
D_MODEL = 32
N_HEADS = 4
D_HEAD = D_MODEL // N_HEADS
D_FF = 64
NUM_LAYERS = 2
BATCH = 2
SEQ = 8
LN_EPS = 1e-5            # nn.LayerNorm default

# Set to jnp.bfloat16 on v6e/v7x: MXU-native operands, half the weight VMEM.
MATMUL_DTYPE = jnp.float32


def _layer_norm(v, gamma, beta):
    mu = jnp.mean(v, axis=-1, keepdims=True)
    var = jnp.mean((v - mu) ** 2, axis=-1, keepdims=True)
    return (v - mu) * jax.lax.rsqrt(var + LN_EPS) * gamma + beta


def encoder_layer_kernel(
    # inputs (grid axis = layer index)
    x_ref,     # (N, D)  initial activations; constant index_map -> fetched once
    mask_ref,  # (N, N)  additive attention bias (0 / -1e30); fetched once
    wq_ref,    # (D, D)  layer-l slice (leading L axis squeezed by BlockSpec)
    wk_ref,    # (D, D)
    wv_ref,    # (D, D)
    wo_ref,    # (D, D)
    w1_ref,    # (D, F)
    b1_ref,    # (1, F)
    w2_ref,    # (F, D)
    dvec_ref,  # (9, D)  rows: [bq, bk, bv, bo, b2, ln1_g, ln1_b, ln2_g, ln2_b]
    # output
    o_ref,     # (N, D)  activation carry; resident across the layer grid axis
    *,
    n_heads: int,
):
    l = pl.program_id(0)

    @pl.when(l == 0)
    def _():
        o_ref[...] = x_ref[...]

    n_tok, d_model = o_ref.shape
    d_head = d_model // n_heads
    scale = 1.0 / jnp.sqrt(jnp.float32(d_head))

    dvec = dvec_ref[...]
    bq, bk, bv = dvec[0:1, :], dvec[1:2, :], dvec[2:3, :]
    bo, b2 = dvec[3:4, :], dvec[4:5, :]
    ln1_g, ln1_b = dvec[5:6, :], dvec[6:7, :]
    ln2_g, ln2_b = dvec[7:8, :], dvec[8:9, :]

    x = o_ref[...]                      # (N, D) f32, VMEM resident
    xm = x.astype(MATMUL_DTYPE)

    # ---- Q/K/V projections: three full-width depth-D MXU contractions ----
    # (separate weight slabs -> no sub-lane-tile slices of a fused QKV output)
    q = jnp.dot(xm, wq_ref[...].astype(MATMUL_DTYPE),
                preferred_element_type=jnp.float32) + bq
    k = jnp.dot(xm, wk_ref[...].astype(MATMUL_DTYPE),
                preferred_element_type=jnp.float32) + bk
    v = jnp.dot(xm, wv_ref[...].astype(MATMUL_DTYPE),
                preferred_element_type=jnp.float32) + bv

    # ---- split heads -> (H, N, dh) ----
    # TODO(synk): at real sizes keep d_head a multiple of 128 so these per-head
    # slices are lane-tile aligned views instead of relayouts.
    def split_heads(t):
        return jnp.stack(
            [t[:, h * d_head:(h + 1) * d_head] for h in range(n_heads)], axis=0)

    qh = split_heads(q).astype(MATMUL_DTYPE)
    kh = split_heads(k).astype(MATMUL_DTYPE)
    vh = split_heads(v).astype(MATMUL_DTYPE)

    # ---- scores + softmax (f32) ----
    s = jnp.einsum("hqd,hkd->hqk", qh, kh,
                   preferred_element_type=jnp.float32) * scale
    s = s + mask_ref[...][None, :, :]            # precomputed additive bias
    s = s - jnp.max(s, axis=-1, keepdims=True)
    p = jnp.exp(s)
    denom = jnp.sum(p, axis=-1, keepdims=True)
    inv = pl.reciprocal(denom, approx=True)      # EUP slot (free-ish)
    inv = inv * (2.0 - denom * inv)              # one Newton step (~1e-5 rel err)
    p = p * inv

    # ---- context and output projection (head reduction on the MXU) ----
    ctx = jnp.einsum("hqk,hkd->hqd", p.astype(MATMUL_DTYPE), vh,
                     preferred_element_type=jnp.float32)     # (H, N, dh)
    ctx2 = jnp.concatenate([ctx[h] for h in range(n_heads)], axis=1)  # (N, D)
    attn = jnp.dot(ctx2.astype(MATMUL_DTYPE), wo_ref[...].astype(MATMUL_DTYPE),
                   preferred_element_type=jnp.float32) + bo

    # ---- AddNorm 1 (post-norm) ----
    y1 = _layer_norm(x + attn, ln1_g, ln1_b)

    # ---- position-wise FFN ----
    h1 = jnp.dot(y1.astype(MATMUL_DTYPE), w1_ref[...].astype(MATMUL_DTYPE),
                 preferred_element_type=jnp.float32) + b1_ref[...]
    h1 = jnp.maximum(h1, 0.0)
    ffn = jnp.dot(h1.astype(MATMUL_DTYPE), w2_ref[...].astype(MATMUL_DTYPE),
                  preferred_element_type=jnp.float32) + b2

    # ---- AddNorm 2 -> carry to next layer ----
    o_ref[...] = _layer_norm(y1 + ffn, ln2_g, ln2_b)


def pack_encoder_params(all_params):
    """Stack per-layer params along a leading L axis; pack small vectors."""
    stack = lambda key: jnp.stack([p[key] for p in all_params], axis=0)
    dvec = jnp.stack(
        [jnp.concatenate([p["bq"], p["bk"], p["bv"], p["bo"], p["b2"],
                          p["ln1_g"], p["ln1_b"], p["ln2_g"], p["ln2_b"]],
                         axis=0)
         for p in all_params], axis=0)                        # (L, 9, D)
    return {"wq": stack("wq"), "wk": stack("wk"), "wv": stack("wv"),
            "wo": stack("wo"), "w1": stack("w1"), "b1": stack("b1"),
            "w2": stack("w2"), "dvec": dvec}


@jax.jit
def encoder_forward(x, packed):
    B, S, D = x.shape
    N = B * S
    L, _, F = packed["w1"].shape

    # block-diagonal "same batch element" additive bias, built ONCE (outside
    # the per-layer grid): 0 where query/key share a batch element, -1e30 else.
    # TODO(synk): optional user attention mask not plumbed (forward uses mask=None).
    tok_b = jnp.arange(N, dtype=jnp.int32) // S
    mask_bias = jnp.where(tok_b[:, None] == tok_b[None, :],
                          0.0, -1e30).astype(jnp.float32)

    kernel = functools.partial(encoder_layer_kernel, n_heads=N_HEADS)

    def const_spec(*shape):               # fetched once, resident (index fixed)
        return pl.BlockSpec(shape, lambda l, _n=len(shape): (0,) * _n)

    def layer_spec(*tail):                # streamed per layer, leading dim squeezed
        return pl.BlockSpec((None,) + tail,
                            lambda l, _n=len(tail): (l,) + (0,) * _n)

    out_flat = pl.pallas_call(
        kernel,
        out_shape=jax.ShapeDtypeStruct((N, D), jnp.float32),
        grid=(L,),
        in_specs=[
            const_spec(N, D),        # x
            const_spec(N, N),        # mask bias
            layer_spec(D, D),        # wq
            layer_spec(D, D),        # wk
            layer_spec(D, D),        # wv
            layer_spec(D, D),        # wo
            layer_spec(D, F),        # w1
            layer_spec(1, F),        # b1
            layer_spec(F, D),        # w2
            layer_spec(9, D),        # dvec (biases + LN params)
        ],
        # constant index_map across the layer axis -> output block is the
        # VMEM-resident activation carry (written back to HBM only at the end).
        out_specs=pl.BlockSpec((N, D), lambda l: (0, 0)),
        compiler_params=pltpu.CompilerParams(
            dimension_semantics=("arbitrary",)),   # layer axis is a carry
    )(x.reshape(N, D), mask_bias,
      packed["wq"], packed["wk"], packed["wv"], packed["wo"],
      packed["w1"], packed["b1"], packed["w2"], packed["dvec"])
    return out_flat.reshape(B, S, D)


def init_layer_params(key):
    ks = jax.random.split(key, 16)
    s_d = 1.0 / jnp.sqrt(jnp.float32(D_MODEL))
    s_f = 1.0 / jnp.sqrt(jnp.float32(D_FF))
    n = jax.random.normal
    return {
        # attention projections (stored input-major: y = x @ W + b)
        "wq": n(ks[0], (D_MODEL, D_MODEL), jnp.float32) * s_d,
        "bq": n(ks[1], (1, D_MODEL), jnp.float32) * 0.1,
        "wk": n(ks[2], (D_MODEL, D_MODEL), jnp.float32) * s_d,
        "bk": n(ks[3], (1, D_MODEL), jnp.float32) * 0.1,
        "wv": n(ks[4], (D_MODEL, D_MODEL), jnp.float32) * s_d,
        "bv": n(ks[5], (1, D_MODEL), jnp.float32) * 0.1,
        "wo": n(ks[6], (D_MODEL, D_MODEL), jnp.float32) * s_d,
        "bo": n(ks[7], (1, D_MODEL), jnp.float32) * 0.1,
        # layer norms
        "ln1_g": 1.0 + n(ks[8], (1, D_MODEL), jnp.float32) * 0.1,
        "ln1_b": n(ks[9], (1, D_MODEL), jnp.float32) * 0.1,
        "ln2_g": 1.0 + n(ks[10], (1, D_MODEL), jnp.float32) * 0.1,
        "ln2_b": n(ks[11], (1, D_MODEL), jnp.float32) * 0.1,
        # FFN
        "w1": n(ks[12], (D_MODEL, D_FF), jnp.float32) * s_d,
        "b1": n(ks[13], (1, D_FF), jnp.float32) * 0.1,
        "w2": n(ks[14], (D_FF, D_MODEL), jnp.float32) * s_f,
        "b2": n(ks[15], (1, D_MODEL), jnp.float32) * 0.1,
    }


def reference_forward(x, all_params):
    # pure-JAX reference (mirrors the PyTorch module) for sanity checking
    def ln(v, g, b):
        mu = jnp.mean(v, axis=-1, keepdims=True)
        var = jnp.mean((v - mu) ** 2, axis=-1, keepdims=True)
        return (v - mu) * jax.lax.rsqrt(var + LN_EPS) * g + b

    for p in all_params:
        B, S, D = x.shape
        dh = D // N_HEADS
        q = x @ p["wq"] + p["bq"]
        k = x @ p["wk"] + p["bk"]
        v = x @ p["wv"] + p["bv"]
        q = q.reshape(B, S, N_HEADS, dh).transpose(0, 2, 1, 3)
        k = k.reshape(B, S, N_HEADS, dh).transpose(0, 2, 1, 3)
        v = v.reshape(B, S, N_HEADS, dh).transpose(0, 2, 1, 3)
        s = jnp.einsum("bhqd,bhkd->bhqk", q, k) / jnp.sqrt(jnp.float32(dh))
        a = jax.nn.softmax(s, axis=-1)
        o = jnp.einsum("bhqk,bhkd->bhqd", a, v).transpose(0, 2, 1, 3).reshape(B, S, D)
        o = o @ p["wo"] + p["bo"]
        x = ln(x + o, p["ln1_g"], p["ln1_b"])
        f = jnp.maximum(x @ p["w1"] + p["b1"], 0.0) @ p["w2"] + p["b2"]
        x = ln(x + f, p["ln2_g"], p["ln2_b"])
    return x


if __name__ == "__main__":
    key = jax.random.PRNGKey(0)
    key, xkey = jax.random.split(key)
    x = jax.random.normal(xkey, (BATCH, SEQ, D_MODEL), jnp.float32)

    layer_keys = jax.random.split(key, NUM_LAYERS)
    all_params = [init_layer_params(k) for k in layer_keys]
    packed = pack_encoder_params(all_params)

    out = jax.block_until_ready(encoder_forward(x, packed))
    ref = reference_forward(x, all_params)

    assert out.shape == (BATCH, SEQ, D_MODEL)
    tol = 2e-3 if MATMUL_DTYPE == jnp.float32 else 3e-2
    err = float(jnp.max(jnp.abs(out - ref)))
    assert jnp.allclose(out, ref, atol=tol, rtol=tol), (
        f"mismatch vs reference: max abs err {err}")

    print("KERNEL_OK")
</pallas_src>

<mosaic_0001>
module attributes {stable_mosaic.version = 11 : i64} {
  func.func @encoder_layer_kernel(%arg0: i32, %arg1: memref<16x32xf32, #tpu.memory_space<vmem>>, %arg2: memref<16x16xf32, #tpu.memory_space<vmem>>, %arg3: memref<1x32x32xf32, #tpu.memory_space<vmem>>, %arg4: memref<1x32x32xf32, #tpu.memory_space<vmem>>, %arg5: memref<1x32x32xf32, #tpu.memory_space<vmem>>, %arg6: memref<1x32x32xf32, #tpu.memory_space<vmem>>, %arg7: memref<1x32x64xf32, #tpu.memory_space<vmem>>, %arg8: memref<1x1x64xf32, #tpu.memory_space<vmem>>, %arg9: memref<1x64x32xf32, #tpu.memory_space<vmem>>, %arg10: memref<1x9x32xf32, #tpu.memory_space<vmem>>, %arg11: memref<16x32xf32, #tpu.memory_space<vmem>>) attributes {dimension_semantics = [#tpu.dimension_semantics<arbitrary>], iteration_bounds = array<i64: 2>, scalar_prefetch = 0 : i64, scratch_operands = 0 : i64, tpu.core_type = #tpu.core_type<tc>, window_params = [{pipeline_mode = #tpu.pipeline_mode<synchronous>, transform_indices = @transform_0, window_bounds = array<i64: 16, 32>}, {pipeline_mode = #tpu.pipeline_mode<synchronous>, transform_indices = @transform_1, window_bounds = array<i64: 16, 16>}, {transform_indices = @transform_2, window_bounds = array<i64: 1, 32, 32>}, {transform_indices = @transform_3, window_bounds = array<i64: 1, 32, 32>}, {transform_indices = @transform_4, window_bounds = array<i64: 1, 32, 32>}, {transform_indices = @transform_5, window_bounds = array<i64: 1, 32, 32>}, {transform_indices = @transform_6, window_bounds = array<i64: 1, 32, 64>}, {transform_indices = @transform_7, window_bounds = array<i64: 1, 1, 64>}, {transform_indices = @transform_8, window_bounds = array<i64: 1, 64, 32>}, {transform_indices = @transform_9, window_bounds = array<i64: 1, 9, 32>}, {pipeline_mode = #tpu.pipeline_mode<synchronous>, transform_indices = @transform_10, window_bounds = array<i64: 16, 32>}]} {
    %c0_i32 = arith.constant 0 : i32
    %0 = arith.cmpi eq, %arg0, %c0_i32 : i32
    %1 = arith.extui %0 : i1 to i32
    %c0_i32_0 = arith.constant 0 : i32
    %2 = arith.cmpi ne, %1, %c0_i32_0 : i32
    scf.if %2 {
      %c0_53 = arith.constant 0 : index
      %c0_54 = arith.constant 0 : index
      %156 = vector.load %arg1[%c0_53, %c0_54] : memref<16x32xf32, #tpu.memory_space<vmem>>, vector<16x32xf32>
      %c0_55 = arith.constant 0 : index
      %c0_56 = arith.constant 0 : index
      %157 = vector.load %arg11[%c0_55, %c0_56] : memref<16x32xf32, #tpu.memory_space<vmem>>, vector<16x32xf32>
      tpu.vector_store %arg11[%c0_55, %c0_56], %156 {strides = array<i32>} : memref<16x32xf32, #tpu.memory_space<vmem>>, vector<16x32xf32>,
    } else {
    }
    %cst = arith.constant 8.000000e+00 : f32
    %3 = math.sqrt %cst : f32
    %cst_1 = arith.constant 1.000000e+00 : f32
    %4 = arith.divf %cst_1, %3 : f32
    %c0 = arith.constant 0 : index
    %c0_2 = arith.constant 0 : index
    %c0_3 = arith.constant 0 : index
    %5 = vector.load %arg10[%c0, %c0_2, %c0_3] : memref<1x9x32xf32, #tpu.memory_space<vmem>>, vector<1x9x32xf32>
    %6 = vector.shape_cast %5 : vector<1x9x32xf32> to vector<9x32xf32>
    %7 = vector.extract_strided_slice %6 {offsets = [0, 0], sizes = [1, 32], strides = [1, 1]} : vector<9x32xf32> to vector<1x32xf32>
    %8 = vector.extract_strided_slice %6 {offsets = [1, 0], sizes = [1, 32], strides = [1, 1]} : vector<9x32xf32> to vector<1x32xf32>
    %9 = vector.extract_strided_slice %6 {offsets = [2, 0], sizes = [1, 32], strides = [1, 1]} : vector<9x32xf32> to vector<1x32xf32>
    %10 = vector.extract_strided_slice %6 {offsets = [3, 0], sizes = [1, 32], strides = [1, 1]} : vector<9x32xf32> to vector<1x32xf32>
    %11 = vector.extract_strided_slice %6 {offsets = [4, 0], sizes = [1, 32], strides = [1, 1]} : vector<9x32xf32> to vector<1x32xf32>
    %12 = vector.extract_strided_slice %6 {offsets = [5, 0], sizes = [1, 32], strides = [1, 1]} : vector<9x32xf32> to vector<1x32xf32>
    %13 = vector.extract_strided_slice %6 {offsets = [6, 0], sizes = [1, 32], strides = [1, 1]} : vector<9x32xf32> to vector<1x32xf32>
    %14 = vector.extract_strided_slice %6 {offsets = [7, 0], sizes = [1, 32], strides = [1, 1]} : vector<9x32xf32> to vector<1x32xf32>
    %15 = vector.extract_strided_slice %6 {offsets = [8, 0], sizes = [1, 32], strides = [1, 1]} : vector<9x32xf32> to vector<1x32xf32>
    %c0_4 = arith.constant 0 : index
    %c0_5 = arith.constant 0 : index
    %16 = vector.load %arg11[%c0_4, %c0_5] : memref<16x32xf32, #tpu.memory_space<vmem>>, vector<16x32xf32>
    %c0_6 = arith.constant 0 : index
    %c0_7 = arith.constant 0 : index
    %c0_8 = arith.constant 0 : index
    %17 = vector.load %arg3[%c0_6, %c0_7, %c0_8] : memref<1x32x32xf32, #tpu.memory_space<vmem>>, vector<1x32x32xf32>
    %18 = vector.shape_cast %17 : vector<1x32x32xf32> to vector<32x32xf32>
    %cst_9 = arith.constant dense<0.000000e+00> : vector<16x32xf32>
    %19 = tpu.matmul %16, %18, %cst_9 {dimension_numbers = #tpu.dot_dimension_numbers<[1], [0], [0], [1], [0, 0, 1, 1], [], []>} : vector<16x32xf32>, vector<32x32xf32>, vector<16x32xf32> -> vector<16x32xf32>
    %20 = vector.broadcast %7 : vector<1x32xf32> to vector<16x32xf32>
    %21 = arith.addf %19, %20 : vector<16x32xf32>
    %c0_10 = arith.constant 0 : index
    %c0_11 = arith.constant 0 : index
    %c0_12 = arith.constant 0 : index
    %22 = vector.load %arg4[%c0_10, %c0_11, %c0_12] : memref<1x32x32xf32, #tpu.memory_space<vmem>>, vector<1x32x32xf32>
    %23 = vector.shape_cast %22 : vector<1x32x32xf32> to vector<32x32xf32>
    %cst_13 = arith.constant dense<0.000000e+00> : vector<16x32xf32>
    %24 = tpu.matmul %16, %23, %cst_13 {dimension_numbers = #tpu.dot_dimension_numbers<[1], [0], [0], [1], [0, 0, 1, 1], [], []>} : vector<16x32xf32>, vector<32x32xf32>, vector<16x32xf32> -> vector<16x32xf32>
    %25 = vector.broadcast %8 : vector<1x32xf32> to vector<16x32xf32>
    %26 = arith.addf %24, %25 : vector<16x32xf32>
    %c0_14 = arith.constant 0 : index
    %c0_15 = arith.constant 0 : index
    %c0_16 = arith.constant 0 : index
    %27 = vector.load %arg5[%c0_14, %c0_15, %c0_16] : memref<1x32x32xf32, #tpu.memory_space<vmem>>, vector<1x32x32xf32>
    %28 = vector.shape_cast %27 : vector<1x32x32xf32> to vector<32x32xf32>
    %cst_17 = arith.constant dense<0.000000e+00> : vector<16x32xf32>
    %29 = tpu.matmul %16, %28, %cst_17 {dimension_numbers = #tpu.dot_dimension_numbers<[1], [0], [0], [1], [0, 0, 1, 1], [], []>} : vector<16x32xf32>, vector<32x32xf32>, vector<16x32xf32> -> vector<16x32xf32>
    %30 = vector.broadcast %9 : vector<1x32xf32> to vector<16x32xf32>
    %31 = arith.addf %29, %30 : vector<16x32xf32>
    %32 = vector.extract_strided_slice %21 {offsets = [0, 0], sizes = [16, 8], strides = [1, 1]} : vector<16x32xf32> to vector<16x8xf32>
    %33 = vector.extract_strided_slice %21 {offsets = [0, 8], sizes = [16, 8], strides = [1, 1]} : vector<16x32xf32> to vector<16x8xf32>
    %34 = vector.extract_strided_slice %21 {offsets = [0, 16], sizes = [16, 8], strides = [1, 1]} : vector<16x32xf32> to vector<16x8xf32>
    %35 = vector.extract_strided_slice %21 {offsets = [0, 24], sizes = [16, 8], strides = [1, 1]} : vector<16x32xf32> to vector<16x8xf32>
    %36 = vector.shape_cast %32 : vector<16x8xf32> to vector<1x16x8xf32>
    %37 = vector.shape_cast %33 : vector<16x8xf32> to vector<1x16x8xf32>
    %38 = vector.shape_cast %34 : vector<16x8xf32> to vector<1x16x8xf32>
    %39 = vector.shape_cast %35 : vector<16x8xf32> to vector<1x16x8xf32>
    %40 = tpu.concatenate %36, %37, %38, %39 in 0 : vector<1x16x8xf32>, vector<1x16x8xf32>, vector<1x16x8xf32>, vector<1x16x8xf32> -> vector<4x16x8xf32>
    %41 = vector.extract_strided_slice %26 {offsets = [0, 0], sizes = [16, 8], strides = [1, 1]} : vector<16x32xf32> to vector<16x8xf32>
    %42 = vector.extract_strided_slice %26 {offsets = [0, 8], sizes = [16, 8], strides = [1, 1]} : vector<16x32xf32> to vector<16x8xf32>
    %43 = vector.extract_strided_slice %26 {offsets = [0, 16], sizes = [16, 8], strides = [1, 1]} : vector<16x32xf32> to vector<16x8xf32>
    %44 = vector.extract_strided_slice %26 {offsets = [0, 24], sizes = [16, 8], strides = [1, 1]} : vector<16x32xf32> to vector<16x8xf32>
    %45 = vector.shape_cast %41 : vector<16x8xf32> to vector<1x16x8xf32>
    %46 = vector.shape_cast %42 : vector<16x8xf32> to vector<1x16x8xf32>
    %47 = vector.shape_cast %43 : vector<16x8xf32> to vector<1x16x8xf32>
    %48 = vector.shape_cast %44 : vector<16x8xf32> to vector<1x16x8xf32>
    %49 = tpu.concatenate %45, %46, %47, %48 in 0 : vector<1x16x8xf32>, vector<1x16x8xf32>, vector<1x16x8xf32>, vector<1x16x8xf32> -> vector<4x16x8xf32>
    %50 = vector.extract_strided_slice %31 {offsets = [0, 0], sizes = [16, 8], strides = [1, 1]} : vector<16x32xf32> to vector<16x8xf32>
    %51 = vector.extract_strided_slice %31 {offsets = [0, 8], sizes = [16, 8], strides = [1, 1]} : vector<16x32xf32> to vector<16x8xf32>
    %52 = vector.extract_strided_slice %31 {offsets = [0, 16], sizes = [16, 8], strides = [1, 1]} : vector<16x32xf32> to vector<16x8xf32>
    %53 = vector.extract_strided_slice %31 {offsets = [0, 24], sizes = [16, 8], strides = [1, 1]} : vector<16x32xf32> to vector<16x8xf32>
    %54 = vector.shape_cast %50 : vector<16x8xf32> to vector<1x16x8xf32>
    %55 = vector.shape_cast %51 : vector<16x8xf32> to vector<1x16x8xf32>
    %56 = vector.shape_cast %52 : vector<16x8xf32> to vector<1x16x8xf32>
    %57 = vector.shape_cast %53 : vector<16x8xf32> to vector<1x16x8xf32>
    %58 = tpu.concatenate %54, %55, %56, %57 in 0 : vector<1x16x8xf32>, vector<1x16x8xf32>, vector<1x16x8xf32>, vector<1x16x8xf32> -> vector<4x16x8xf32>
    "tpu.trace_start"() <{level = 10 : i32, message = "hqd,hkd->hqk"}> : () -> ()
    %cst_18 = arith.constant dense<0.000000e+00> : vector<4x16x16xf32>
    %59 = tpu.matmul %40, %49, %cst_18 {dimension_numbers = #tpu.dot_dimension_numbers<[2], [2], [1], [1], [0, 0, 0, 1, 1, 1], [0], [0]>} : vector<4x16x8xf32>, vector<4x16x8xf32>, vector<4x16x16xf32> -> vector<4x16x16xf32>
    "tpu.trace_stop"() : () -> ()
    %60 = vector.broadcast %4 : f32 to vector<4x16x16xf32>
    %61 = arith.mulf %59, %60 : vector<4x16x16xf32>
    %c0_19 = arith.constant 0 : index
    %c0_20 = arith.constant 0 : index
    %62 = vector.load %arg2[%c0_19, %c0_20] : memref<16x16xf32, #tpu.memory_space<vmem>>, vector<16x16xf32>
    %63 = vector.shape_cast %62 : vector<16x16xf32> to vector<1x16x16xf32>
    %64 = vector.broadcast %63 : vector<1x16x16xf32> to vector<4x16x16xf32>
    %65 = arith.addf %61, %64 : vector<4x16x16xf32>
    %cst_21 = arith.constant dense<0xFF800000> : vector<4x16xf32>
    %66 = vector.multi_reduction <maximumf>, %65, %cst_21 [2] : vector<4x16x16xf32> to vector<4x16xf32>
    %67 = vector.shape_cast %66 : vector<4x16xf32> to vector<4x16x1xf32>
    %68 = vector.broadcast %67 : vector<4x16x1xf32> to vector<4x16x16xf32>
    %69 = arith.subf %65, %68 : vector<4x16x16xf32>
    %70 = math.exp %69 : vector<4x16x16xf32>
    %cst_22 = arith.constant dense<0.000000e+00> : vector<4x16xf32>
    %71 = vector.multi_reduction <add>, %70, %cst_22 [2] : vector<4x16x16xf32> to vector<4x16xf32>
    %72 = vector.shape_cast %71 : vector<4x16xf32> to vector<4x16x1xf32>
    %73 = tpu.reciprocal %72 {approx = true} : vector<4x16x1xf32> -> vector<4x16x1xf32>
    %74 = arith.mulf %72, %73 : vector<4x16x1xf32>
    %cst_23 = arith.constant 2.000000e+00 : f32
    %75 = vector.broadcast %cst_23 : f32 to vector<4x16x1xf32>
    %76 = arith.subf %75, %74 : vector<4x16x1xf32>
    %77 = arith.mulf %73, %76 : vector<4x16x1xf32>
    %78 = vector.broadcast %77 : vector<4x16x1xf32> to vector<4x16x16xf32>
    %79 = arith.mulf %70, %78 : vector<4x16x16xf32>
    "tpu.trace_start"() <{level = 10 : i32, message = "hqk,hkd->hqd"}> : () -> ()
    %cst_24 = arith.constant dense<0.000000e+00> : vector<4x16x8xf32>
    %80 = tpu.matmul %79, %58, %cst_24 {dimension_numbers = #tpu.dot_dimension_numbers<[2], [1], [1], [2], [0, 0, 0, 1, 1, 2], [0], [0]>} : vector<4x16x16xf32>, vector<4x16x8xf32>, vector<4x16x8xf32> -> vector<4x16x8xf32>
    "tpu.trace_stop"() : () -> ()
    %81 = vector.extract_strided_slice %80 {offsets = [0, 0, 0], sizes = [1, 16, 8], strides = [1, 1, 1]} : vector<4x16x8xf32> to vector<1x16x8xf32>
    %82 = vector.shape_cast %81 : vector<1x16x8xf32> to vector<16x8xf32>
    %83 = vector.extract_strided_slice %80 {offsets = [1, 0, 0], sizes = [1, 16, 8], strides = [1, 1, 1]} : vector<4x16x8xf32> to vector<1x16x8xf32>
    %84 = vector.shape_cast %83 : vector<1x16x8xf32> to vector<16x8xf32>
    %85 = vector.extract_strided_slice %80 {offsets = [2, 0, 0], sizes = [1, 16, 8], strides = [1, 1, 1]} : vector<4x16x8xf32> to vector<1x16x8xf32>
    %86 = vector.shape_cast %85 : vector<1x16x8xf32> to vector<16x8xf32>
    %87 = vector.extract_strided_slice %80 {offsets = [3, 0, 0], sizes = [1, 16, 8], strides = [1, 1, 1]} : vector<4x16x8xf32> to vector<1x16x8xf32>
    %88 = vector.shape_cast %87 : vector<1x16x8xf32> to vector<16x8xf32>
    %89 = tpu.concatenate %82, %84, %86, %88 in 1 : vector<16x8xf32>, vector<16x8xf32>, vector<16x8xf32>, vector<16x8xf32> -> vector<16x32xf32>
    %c0_25 = arith.constant 0 : index
    %c0_26 = arith.constant 0 : index
    %c0_27 = arith.constant 0 : index
    %90 = vector.load %arg6[%c0_25, %c0_26, %c0_27] : memref<1x32x32xf32, #tpu.memory_space<vmem>>, vector<1x32x32xf32>
    %91 = vector.shape_cast %90 : vector<1x32x32xf32> to vector<32x32xf32>
    %cst_28 = arith.constant dense<0.000000e+00> : vector<16x32xf32>
    %92 = tpu.matmul %89, %91, %cst_28 {dimension_numbers = #tpu.dot_dimension_numbers<[1], [0], [0], [1], [0, 0, 1, 1], [], []>} : vector<16x32xf32>, vector<32x32xf32>, vector<16x32xf32> -> vector<16x32xf32>
    %93 = vector.broadcast %10 : vector<1x32xf32> to vector<16x32xf32>
    %94 = arith.addf %92, %93 : vector<16x32xf32>
    %95 = arith.addf %16, %94 : vector<16x32xf32>
    %cst_29 = arith.constant dense<0.000000e+00> : vector<16xf32>
    %96 = vector.multi_reduction <add>, %95, %cst_29 [1] : vector<16x32xf32> to vector<16xf32>
    %97 = vector.shape_cast %96 : vector<16xf32> to vector<16x1xf32>
    %cst_30 = arith.constant 3.200000e+01 : f32
    %98 = vector.broadcast %cst_30 : f32 to vector<16x1xf32>
    %99 = arith.divf %97, %98 : vector<16x1xf32>
    %100 = vector.broadcast %99 : vector<16x1xf32> to vector<16x32xf32>
    %101 = arith.subf %95, %100 : vector<16x32xf32>
    %102 = arith.mulf %101, %101 : vector<16x32xf32>
    %cst_31 = arith.constant dense<0.000000e+00> : vector<16xf32>
    %103 = vector.multi_reduction <add>, %102, %cst_31 [1] : vector<16x32xf32> to vector<16xf32>
    %104 = vector.shape_cast %103 : vector<16xf32> to vector<16x1xf32>
    %cst_32 = arith.constant 3.200000e+01 : f32
    %105 = vector.broadcast %cst_32 : f32 to vector<16x1xf32>
    %106 = arith.divf %104, %105 : vector<16x1xf32>
    %107 = vector.broadcast %99 : vector<16x1xf32> to vector<16x32xf32>
    %108 = arith.subf %95, %107 : vector<16x32xf32>
    %cst_33 = arith.constant 9.99999974E-6 : f32
    %109 = vector.broadcast %cst_33 : f32 to vector<16x1xf32>
    %110 = arith.addf %106, %109 : vector<16x1xf32>
    %111 = math.rsqrt %110 : vector<16x1xf32>
    %112 = vector.broadcast %111 : vector<16x1xf32> to vector<16x32xf32>
    %113 = arith.mulf %108, %112 : vector<16x32xf32>
    %114 = vector.broadcast %12 : vector<1x32xf32> to vector<16x32xf32>
    %115 = arith.mulf %113, %114 : vector<16x32xf32>
    %116 = vector.broadcast %13 : vector<1x32xf32> to vector<16x32xf32>
    %117 = arith.addf %115, %116 : vector<16x32xf32>
    %c0_34 = arith.constant 0 : index
    %c0_35 = arith.constant 0 : index
    %c0_36 = arith.constant 0 : index
    %118 = vector.load %arg7[%c0_34, %c0_35, %c0_36] : memref<1x32x64xf32, #tpu.memory_space<vmem>>, vector<1x32x64xf32>
    %119 = vector.shape_cast %118 : vector<1x32x64xf32> to vector<32x64xf32>
    %cst_37 = arith.constant dense<0.000000e+00> : vector<16x64xf32>
    %120 = tpu.matmul %117, %119, %cst_37 {dimension_numbers = #tpu.dot_dimension_numbers<[1], [0], [0], [1], [0, 0, 1, 1], [], []>} : vector<16x32xf32>, vector<32x64xf32>, vector<16x64xf32> -> vector<16x64xf32>
    %c0_38 = arith.constant 0 : index
    %c0_39 = arith.constant 0 : index
    %c0_40 = arith.constant 0 : index
    %121 = vector.load %arg8[%c0_38, %c0_39, %c0_40] : memref<1x1x64xf32, #tpu.memory_space<vmem>>, vector<1x1x64xf32>
    %122 = vector.shape_cast %121 : vector<1x1x64xf32> to vector<1x64xf32>
    %123 = vector.broadcast %122 : vector<1x64xf32> to vector<16x64xf32>
    %124 = arith.addf %120, %123 : vector<16x64xf32>
    %cst_41 = arith.constant 0.000000e+00 : f32
    %125 = vector.broadcast %cst_41 : f32 to vector<16x64xf32>
    %126 = arith.maximumf %124, %125 : vector<16x64xf32>
    %c0_42 = arith.constant 0 : index
    %c0_43 = arith.constant 0 : index
    %c0_44 = arith.constant 0 : index
    %127 = vector.load %arg9[%c0_42, %c0_43, %c0_44] : memref<1x64x32xf32, #tpu.memory_space<vmem>>, vector<1x64x32xf32>
    %128 = vector.shape_cast %127 : vector<1x64x32xf32> to vector<64x32xf32>
    %cst_45 = arith.constant dense<0.000000e+00> : vector<16x32xf32>
    %129 = tpu.matmul %126, %128, %cst_45 {dimension_numbers = #tpu.dot_dimension_numbers<[1], [0], [0], [1], [0, 0, 1, 1], [], []>} : vector<16x64xf32>, vector<64x32xf32>, vector<16x32xf32> -> vector<16x32xf32>
    %130 = vector.broadcast %11 : vector<1x32xf32> to vector<16x32xf32>
    %131 = arith.addf %129, %130 : vector<16x32xf32>
    %132 = arith.addf %117, %131 : vector<16x32xf32>
    %cst_46 = arith.constant dense<0.000000e+00> : vector<16xf32>
    %133 = vector.multi_reduction <add>, %132, %cst_46 [1] : vector<16x32xf32> to vector<16xf32>
    %134 = vector.shape_cast %133 : vector<16xf32> to vector<16x1xf32>
    %cst_47 = arith.constant 3.200000e+01 : f32
    %135 = vector.broadcast %cst_47 : f32 to vector<16x1xf32>
    %136 = arith.divf %134, %135 : vector<16x1xf32>
    %137 = vector.broadcast %136 : vector<16x1xf32> to vector<16x32xf32>
    %138 = arith.subf %132, %137 : vector<16x32xf32>
    %139 = arith.mulf %138, %138 : vector<16x32xf32>
    %cst_48 = arith.constant dense<0.000000e+00> : vector<16xf32>
    %140 = vector.multi_reduction <add>, %139, %cst_48 [1] : vector<16x32xf32> to vector<16xf32>
    %141 = vector.shape_cast %140 : vector<16xf32> to vector<16x1xf32>
    %cst_49 = arith.constant 3.200000e+01 : f32
    %142 = vector.broadcast %cst_49 : f32 to vector<16x1xf32>
    %143 = arith.divf %141, %142 : vector<16x1xf32>
    %144 = vector.broadcast %136 : vector<16x1xf32> to vector<16x32xf32>
    %145 = arith.subf %132, %144 : vector<16x32xf32>
    %cst_50 = arith.constant 9.99999974E-6 : f32
    %146 = vector.broadcast %cst_50 : f32 to vector<16x1xf32>
    %147 = arith.addf %143, %146 : vector<16x1xf32>
    %148 = math.rsqrt %147 : vector<16x1xf32>
    %149 = vector.broadcast %148 : vector<16x1xf32> to vector<16x32xf32>
    %150 = arith.mulf %145, %149 : vector<16x32xf32>
    %151 = vector.broadcast %14 : vector<1x32xf32> to vector<16x32xf32>
    %152 = arith.mulf %150, %151 : vector<16x32xf32>
    %153 = vector.broadcast %15 : vector<1x32xf32> to vector<16x32xf32>
    %154 = arith.addf %152, %153 : vector<16x32xf32>
    %c0_51 = arith.constant 0 : index
    %c0_52 = arith.constant 0 : index
    %155 = vector.load %arg11[%c0_51, %c0_52] : memref<16x32xf32, #tpu.memory_space<vmem>>, vector<16x32xf32>
    tpu.vector_store %arg11[%c0_51, %c0_52], %154 {strides = array<i32>} : memref<16x32xf32, #tpu.memory_space<vmem>>, vector<16x32xf32>,
    return
  }
  func.func @transform_0(%arg0: i32) -> (i32, i32) {
    %c0_i32 = arith.constant 0 : i32
    %c0_i32_0 = arith.constant 0 : i32
    %c0_i32_1 = arith.constant 0 : i32
    return %c0_i32, %c0_i32_0 : i32, i32
  }
  func.func @transform_1(%arg0: i32) -> (i32, i32) {
    %c0_i32 = arith.constant 0 : i32
    %c0_i32_0 = arith.constant 0 : i32
    %c0_i32_1 = arith.constant 0 : i32
    return %c0_i32, %c0_i32_0 : i32, i32
  }
  func.func @transform_2(%arg0: i32) -> (i32, i32, i32) {
    %c0_i32 = arith.constant 0 : i32
    %c0_i32_0 = arith.constant 0 : i32
    %c0_i32_1 = arith.constant 0 : i32
    return %arg0, %c0_i32, %c0_i32_0 : i32, i32, i32
  }
  func.func @transform_3(%arg0: i32) -> (i32, i32, i32) {
    %c0_i32 = arith.constant 0 : i32
    %c0_i32_0 = arith.constant 0 : i32
    %c0_i32_1 = arith.constant 0 : i32
    return %arg0, %c0_i32, %c0_i32_0 : i32, i32, i32
  }
  func.func @transform_4(%arg0: i32) -> (i32, i32, i32) {
    %c0_i32 = arith.constant 0 : i32
    %c0_i32_0 = arith.constant 0 : i32
    %c0_i32_1 = arith.constant 0 : i32
    return %arg0, %c0_i32, %c0_i32_0 : i32, i32, i32
  }
  func.func @transform_5(%arg0: i32) -> (i32, i32, i32) {
    %c0_i32 = arith.constant 0 : i32
    %c0_i32_0 = arith.constant 0 : i32
    %c0_i32_1 = arith.constant 0 : i32
    return %arg0, %c0_i32, %c0_i32_0 : i32, i32, i32
  }
  func.func @transform_6(%arg0: i32) -> (i32, i32, i32) {
    %c0_i32 = arith.constant 0 : i32
    %c0_i32_0 = arith.constant 0 : i32
    %c0_i32_1 = arith.constant 0 : i32
    return %arg0, %c0_i32, %c0_i32_0 : i32, i32, i32
  }
  func.func @transform_7(%arg0: i32) -> (i32, i32, i32) {
    %c0_i32 = arith.constant 0 : i32
    %c0_i32_0 = arith.constant 0 : i32
    %c0_i32_1 = arith.constant 0 : i32
    return %arg0, %c0_i32, %c0_i32_0 : i32, i32, i32
  }
  func.func @transform_8(%arg0: i32) -> (i32, i32, i32) {
    %c0_i32 = arith.constant 0 : i32
    %c0_i32_0 = arith.constant 0 : i32
    %c0_i32_1 = arith.constant 0 : i32
    return %arg0, %c0_i32, %c0_i32_0 : i32, i32, i32
  }
  func.func @transform_9(%arg0: i32) -> (i32, i32, i32) {
    %c0_i32 = arith.constant 0 : i32
    %c0_i32_0 = arith.constant 0 : i32
    %c0_i32_1 = arith.constant 0 : i32
    return %arg0, %c0_i32, %c0_i32_0 : i32, i32, i32
  }
  func.func @transform_10(%arg0: i32) -> (i32, i32) {
    %c0_i32 = arith.constant 0 : i32
    %c0_i32_0 = arith.constant 0 : i32
    %c0_i32_1 = arith.constant 0 : i32
    return %c0_i32, %c0_i32_0 : i32, i32
  }
}

</mosaic_0001>

<llo_original>
// kernel: encoder_forward.1
$region0: #{encoder_forward.1}
  #allocation0 [shape = 'u32[]', space=smem, size = 0x4, offset = 0x4, fixed_abs, tag = 'smem constant byte address 0x4 - core index']
  #allocation1 [shape = 'u32[72,128]{1,0:T(1,128)}', space=vmem, size = 0x9000, scoped, tag = 'internal scratch']
  %s0 = inlined_call_operand.hbm [shape: f32[16,32], index: 0, kind: input, shape index: {}]
  %s1 = inlined_call_operand.vmem [shape: f32[16,16], index: 1, kind: input, shape index: {}]
  %s2 = inlined_call_operand.vmem [shape: f32[2,32,32], index: 2, kind: input, shape index: {}]
  %s3 = inlined_call_operand.vmem [shape: f32[2,32,32], index: 3, kind: input, shape index: {}]
  %s4 = inlined_call_operand.vmem [shape: f32[2,32,32], index: 4, kind: input, shape index: {}]
  %s5 = inlined_call_operand.hbm [shape: f32[2,32,32], index: 5, kind: input, shape index: {}]
  %s6 = inlined_call_operand.hbm [shape: f32[2,32,64], index: 6, kind: input, shape index: {}]
  %s7 = inlined_call_operand.vmem [shape: f32[2,1,64], index: 7, kind: input, shape index: {}]
  %s8 = inlined_call_operand.vmem [shape: f32[2,64,32], index: 8, kind: input, shape index: {}]
  %s9 = inlined_call_operand.vmem [shape: f32[2,9,32], index: 9, kind: input, shape index: {}]
  %s10 = inlined_call_operand.hbm [shape: f32[16,32], index: 10, kind: output, shape index: {}]
  %s11 = sld [smem:[#allocation0]]
  $region89: #{encoder_forward.1} parent=0
    _
  %s13 = ssub.s32 1, %s11
  %s14 = scalar_select 0, %s13, %s11
  $region1: #{encoder_forward.1} parent=0
    #allocation2 [shape = 'u8[8192]{0}', space=vmem, size = 0x2000, scoped, tag = 'input window, operand 0, single buffered']
    #allocation3 [shape = 's32[2]{0}', space=sflag, size = 0x8, scoped, tag = 'scoped memory for encoder_forward.1']
    #allocation4 [shape = 's32[2]{0}', space=sflag, size = 0x8, scoped, tag = 'scoped memory for encoder_forward.1']
    #allocation5 [shape = 'u8[32768]{0}', space=vmem, size = 0x8000, scoped, tag = 'input window, operand 5']
    #allocation6 [shape = 's32[2]{0}', space=sflag, size = 0x8, scoped, tag = 'scoped memory for encoder_forward.1']
    #allocation7 [shape = 'u8[32768]{0}', space=vmem, size = 0x8000, scoped, tag = 'input window, operand 6']
    #allocation8 [shape = 'u8[8192]{0}', space=vmem, size = 0x2000, scoped, tag = 'output window, operand 0, single buffered']
    %15 = vsyncpa [#allocation3], 0
    %16 = vsyncpa [#allocation6], 0
    %s17 = scalar_lea.sflag [#allocation6], 1
    %18 = vsyncpa %s17, 0
    %19 = vsyncpa [#allocation4], 0
    loop: start=0, step=1, limit=4
    $region2: #{encoder_forward.1} parent=1 // loop_pre_header
      _
    $region3: #{encoder_forward.1} parent=1 // loop_header
      %s21 = sphi 0, %s25
      %p22 = scmp.ge.s32.totalorder %s21, 4
      %s29 = sphi 0, %s29
      %s31 = sphi 0, %s29
      %s32 = sphi 0, %s31
      %s46 = sphi 0, %s32
      %s50 = sphi 0, %s50
      %s52 = sphi 0, %s50
      %s53 = sphi 0, %s52
      %s67 = sphi 0, %s53
      %s73 = sphi 0, %s75
      %s76 = sphi 0, %s73
      %s77 = sphi 0, %s76
      %s93 = sphi 0, %s77
      %s99 = sphi 0, %s101
      %s102 = sphi 0, %s99
      %s103 = sphi 0, %s102
      %s119 = sphi 0, %s103
      %s125 = sphi 0, %s127
      %s128 = sphi 0, %s125
      %s129 = sphi 0, %s128
      %s145 = sphi 0, %s129
      %s151 = sphi 0, %s153
      %s154 = sphi 0, %s151
      %s155 = sphi 0, %s154
      %s171 = sphi 0, %s155
      %s177 = sphi 0, %s179
      %s180 = sphi 0, %s177
      %s181 = sphi 0, %s180
      %s197 = sphi 0, %s181
      %s203 = sphi 0, %s205
      %s206 = sphi 0, %s203
      %s207 = sphi 0, %s206
      %s223 = sphi 0, %s207
      %s229 = sphi 0, %s231
      %s232 = sphi 0, %s229
      %s233 = sphi 0, %s232
      %s249 = sphi 0, %s233
      %s255 = sphi 0, %s257
      %s258 = sphi 0, %s255
      %s259 = sphi 0, %s258
      %s275 = sphi 0, %s259
      %s279 = sphi 0, %s279
      %s281 = sphi 0, %s279
      %s282 = sphi 0, %s281
      %s296 = sphi 0, %s282
    $region4: #{encoder_forward.1} parent=1 // loop_header_branch
      %24 = sbr.rel (%p22) target = $region8
    $region5: #{encoder_forward.1} parent=1 // loop_body
      %s26 = ssub.s32 %s21, 1
      %s27 = ssub.s32 %s21, 2
      %s28 = sadd.s32 %s21, 1
      %s30 = sadd.s32 %s29, 1
      %p33 = scmp.eq.s32.totalorder %s21, 1
      %p34 = scmp.ne.s32.totalorder %s29, %s31
      %p35 = scmp.eq.s32.totalorder %s21, 0
      %p36 = por %p34, %p35
      %p37 = scmp.ne.s32.totalorder %s29, %s31
      %p38 = scmp.eq.s32.totalorder %s26, 1
      %p39 = por %p37, %p38
      %p40 = scmp.ne.s32.totalorder %s31, %s32
      %p41 = scmp.eq.s32.totalorder %s26, 0
      %p42 = por %p40, %p41
      %p43 = scmp.ne.s32.totalorder %s31, %s32
      %p44 = scmp.eq.s32.totalorder %s27, 1
      %p45 = por %p43, %p44
      %p47 = scmp.ne.s32.totalorder %s32, %s46
      %p48 = scmp.eq.s32.totalorder %s27, 0
      %p49 = por %p47, %p48
      %s51 = sadd.s32 %s50, 1
      %p54 = scmp.eq.s32.totalorder %s21, 1
      %p55 = scmp.ne.s32.totalorder %s50, %s52
      %p56 = scmp.eq.s32.totalorder %s21, 0
      %p57 = por %p55, %p56
      %p58 = scmp.ne.s32.totalorder %s50, %s52
      %p59 = scmp.eq.s32.totalorder %s26, 1
      %p60 = por %p58, %p59
      %p61 = scmp.ne.s32.totalorder %s52, %s53
      %p62 = scmp.eq.s32.totalorder %s26, 0
      %p63 = por %p61, %p62
      %p64 = scmp.ne.s32.totalorder %s52, %s53
      %p65 = scmp.eq.s32.totalorder %s27, 1
      %p66 = por %p64, %p65
      %p68 = scmp.ne.s32.totalorder %s53, %s67
      %p69 = scmp.eq.s32.totalorder %s27, 0
      %p70 = por %p68, %p69
      %s71 = ssub.s32 %s21, %s28
      %p72 = scmp.eq.s32.totalorder %s71, 0
      %s74 = sadd.s32 %s73, 1
      %s75 = scalar_select %p72, %s73, %s74
      %p78 = pneg %p72
      %p79 = scmp.eq.s32.totalorder %s21, 1
      %p80 = por %p78, %p79
      %p81 = scmp.ne.s32.totalorder %s73, %s76
      %p82 = scmp.eq.s32.totalorder %s21, 0
      %p83 = por %p81, %p82
      %p84 = scmp.ne.s32.totalorder %s73, %s76
      %p85 = scmp.eq.s32.totalorder %s26, 1
      %p86 = por %p84, %p85
      %p87 = scmp.ne.s32.totalorder %s76, %s77
      %p88 = scmp.eq.s32.totalorder %s26, 0
      %p89 = por %p87, %p88
      %p90 = scmp.ne.s32.totalorder %s76, %s77
      %p91 = scmp.eq.s32.totalorder %s27, 1
      %p92 = por %p90, %p91
      %p94 = scmp.ne.s32.totalorder %s77, %s93
      %p95 = scmp.eq.s32.totalorder %s27, 0
      %p96 = por %p94, %p95
      %s97 = ssub.s32 %s21, %s28
      %p98 = scmp.eq.s32.totalorder %s97, 0
      %s100 = sadd.s32 %s99, 1
      %s101 = scalar_select %p98, %s99, %s100
      %p104 = pneg %p98
      %p105 = scmp.eq.s32.totalorder %s21, 1
      %p106 = por %p104, %p105
      %p107 = scmp.ne.s32.totalorder %s99, %s102
      %p108 = scmp.eq.s32.totalorder %s21, 0
      %p109 = por %p107, %p108
      %p110 = scmp.ne.s32.totalorder %s99, %s102
      %p111 = scmp.eq.s32.totalorder %s26, 1
      %p112 = por %p110, %p111
      %p113 = scmp.ne.s32.totalorder %s102, %s103
      %p114 = scmp.eq.s32.totalorder %s26, 0
      %p115 = por %p113, %p114
      %p116 = scmp.ne.s32.totalorder %s102, %s103
      %p117 = scmp.eq.s32.totalorder %s27, 1
      %p118 = por %p116, %p117
      %p120 = scmp.ne.s32.totalorder %s103, %s119
      %p121 = scmp.eq.s32.totalorder %s27, 0
      %p122 = por %p120, %p121
      %s123 = ssub.s32 %s21, %s28
      %p124 = scmp.eq.s32.totalorder %s123, 0
      %s126 = sadd.s32 %s125, 1
      %s127 = scalar_select %p124, %s125, %s126
      %p130 = pneg %p124
      %p131 = scmp.eq.s32.totalorder %s21, 1
      %p132 = por %p130, %p131
      %p133 = scmp.ne.s32.totalorder %s125, %s128
      %p134 = scmp.eq.s32.totalorder %s21, 0
      %p135 = por %p133, %p134
      %p136 = scmp.ne.s32.totalorder %s125, %s128
      %p137 = scmp.eq.s32.totalorder %s26, 1
      %p138 = por %p136, %p137
      %p139 = scmp.ne.s32.totalorder %s128, %s129
      %p140 = scmp.eq.s32.totalorder %s26, 0
      %p141 = por %p139, %p140
      %p142 = scmp.ne.s32.totalorder %s128, %s129
      %p143 = scmp.eq.s32.totalorder %s27, 1
      %p144 = por %p142, %p143
      %p146 = scmp.ne.s32.totalorder %s129, %s145
      %p147 = scmp.eq.s32.totalorder %s27, 0
      %p148 = por %p146, %p147
      %s149 = ssub.s32 %s21, %s28
      %p150 = scmp.eq.s32.totalorder %s149, 0
      %s152 = sadd.s32 %s151, 1
      %s153 = scalar_select %p150, %s151, %s152
      %p156 = pneg %p150
      %p157 = scmp.eq.s32.totalorder %s21, 1
      %p158 = por %p156, %p157
      %p159 = scmp.ne.s32.totalorder %s151, %s154
      %p160 = scmp.eq.s32.totalorder %s21, 0
      %p161 = por %p159, %p160
      %p162 = scmp.ne.s32.totalorder %s151, %s154
      %p163 = scmp.eq.s32.totalorder %s26, 1
      %p164 = por %p162, %p163
      %p165 = scmp.ne.s32.totalorder %s154, %s155
      %p166 = scmp.eq.s32.totalorder %s26, 0
      %p167 = por %p165, %p166
      %p168 = scmp.ne.s32.totalorder %s154, %s155
      %p169 = scmp.eq.s32.totalorder %s27, 1
      %p170 = por %p168, %p169
      %p172 = scmp.ne.s32.totalorder %s155, %s171
      %p173 = scmp.eq.s32.totalorder %s27, 0
      %p174 = por %p172, %p173
      %s175 = ssub.s32 %s21, %s28
      %p176 = scmp.eq.s32.totalorder %s175, 0
      %s178 = sadd.s32 %s177, 1
      %s179 = scalar_select %p176, %s177, %s178
      %p182 = pneg %p176
      %p183 = scmp.eq.s32.totalorder %s21, 1
      %p184 = por %p182, %p183
      %p185 = scmp.ne.s32.totalorder %s177, %s180
      %p186 = scmp.eq.s32.totalorder %s21, 0
      %p187 = por %p185, %p186
      %p188 = scmp.ne.s32.totalorder %s177, %s180
      %p189 = scmp.eq.s32.totalorder %s26, 1
      %p190 = por %p188, %p189
      %p191 = scmp.ne.s32.totalorder %s180, %s181
      %p192 = scmp.eq.s32.totalorder %s26, 0
      %p193 = por %p191, %p192
      %p194 = scmp.ne.s32.totalorder %s180, %s181
      %p195 = scmp.eq.s32.totalorder %s27, 1
      %p196 = por %p194, %p195
      %p198 = scmp.ne.s32.totalorder %s181, %s197
      %p199 = scmp.eq.s32.totalorder %s27, 0
      %p200 = por %p198, %p199
      %s201 = ssub.s32 %s21, %s28
      %p202 = scmp.eq.s32.totalorder %s201, 0
      %s204 = sadd.s32 %s203, 1
      %s205 = scalar_select %p202, %s203, %s204
      %p208 = pneg %p202
      %p209 = scmp.eq.s32.totalorder %s21, 1
      %p210 = por %p208, %p209
      %p211 = scmp.ne.s32.totalorder %s203, %s206
      %p212 = scmp.eq.s32.totalorder %s21, 0
      %p213 = por %p211, %p212
      %p214 = scmp.ne.s32.totalorder %s203, %s206
      %p215 = scmp.eq.s32.totalorder %s26, 1
      %p216 = por %p214, %p215
      %p217 = scmp.ne.s32.totalorder %s206, %s207
      %p218 = scmp.eq.s32.totalorder %s26, 0
      %p219 = por %p217, %p218
      %p220 = scmp.ne.s32.totalorder %s206, %s207
      %p221 = scmp.eq.s32.totalorder %s27, 1
      %p222 = por %p220, %p221
      %p224 = scmp.ne.s32.totalorder %s207, %s223
      %p225 = scmp.eq.s32.totalorder %s27, 0
      %p226 = por %p224, %p225
      %s227 = ssub.s32 %s21, %s28
      %p228 = scmp.eq.s32.totalorder %s227, 0
      %s230 = sadd.s32 %s229, 1
      %s231 = scalar_select %p228, %s229, %s230
      %p234 = pneg %p228
      %p235 = scmp.eq.s32.totalorder %s21, 1
      %p236 = por %p234, %p235
      %p237 = scmp.ne.s32.totalorder %s229, %s232
      %p238 = scmp.eq.s32.totalorder %s21, 0
      %p239 = por %p237, %p238
      %p240 = scmp.ne.s32.totalorder %s229, %s232
      %p241 = scmp.eq.s32.totalorder %s26, 1
      %p242 = por %p240, %p241
      %p243 = scmp.ne.s32.totalorder %s232, %s233
      %p244 = scmp.eq.s32.totalorder %s26, 0
      %p245 = por %p243, %p244
      %p246 = scmp.ne.s32.totalorder %s232, %s233
      %p247 = scmp.eq.s32.totalorder %s27, 1
      %p248 = por %p246, %p247
      %p250 = scmp.ne.s32.totalorder %s233, %s249
      %p251 = scmp.eq.s32.totalorder %s27, 0
      %p252 = por %p250, %p251
      %s253 = ssub.s32 %s21, %s28
      %p254 = scmp.eq.s32.totalorder %s253, 0
      %s256 = sadd.s32 %s255, 1
      %s257 = scalar_select %p254, %s255, %s256
      %p260 = pneg %p254
      %p261 = scmp.eq.s32.totalorder %s21, 1
      %p262 = por %p260, %p261
      %p263 = scmp.ne.s32.totalorder %s255, %s258
      %p264 = scmp.eq.s32.totalorder %s21, 0
      %p265 = por %p263, %p264
      %p266 = scmp.ne.s32.totalorder %s255, %s258
      %p267 = scmp.eq.s32.totalorder %s26, 1
      %p268 = por %p266, %p267
      %p269 = scmp.ne.s32.totalorder %s258, %s259
      %p270 = scmp.eq.s32.totalorder %s26, 0
      %p271 = por %p269, %p270
      %p272 = scmp.ne.s32.totalorder %s258, %s259
      %p273 = scmp.eq.s32.totalorder %s27, 1
      %p274 = por %p272, %p273
      %p276 = scmp.ne.s32.totalorder %s259, %s275
      %p277 = scmp.eq.s32.totalorder %s27, 0
      %p278 = por %p276, %p277
      %s280 = sadd.s32 %s279, 1
      %p283 = scmp.eq.s32.totalorder %s21, 1
      %p284 = scmp.ne.s32.totalorder %s279, %s281
      %p285 = scmp.eq.s32.totalorder %s21, 0
      %p286 = por %p284, %p285
      %p287 = scmp.ne.s32.totalorder %s279, %s281
      %p288 = scmp.eq.s32.totalorder %s26, 1
      %p289 = por %p287, %p288
      %p290 = scmp.ne.s32.totalorder %s281, %s282
      %p291 = scmp.eq.s32.totalorder %s26, 0
      %p292 = por %p290, %p291
      %p293 = scmp.ne.s32.totalorder %s281, %s282
      %p294 = scmp.eq.s32.totalorder %s27, 1
      %p295 = por %p293, %p294
      %p297 = scmp.ne.s32.totalorder %s282, %s296
      %p298 = scmp.eq.s32.totalorder %s27, 0
      %p299 = por %p297, %p298
      %p300 = scmp.le.s32.totalorder 1, %s21
      %p301 = scmp.lt.s32.totalorder %s21, 3
      %p302 = pnand %p300, %p301
      %p303 = pneg %p302
      // Predicated region
      $region9: #{encoder_forward.1} parent=5 // pred_check
        _
      $region10: #{encoder_forward.1} parent=5 // pred_check_branch
        %305 = sbr.rel (%p302) target = $region12
      $region11: #{encoder_forward.1} parent=5 // pred_region
        %s306 = ssub.s32 %s21, 1
        // Predicated region
        $region13: #{encoder_forward.1} parent=11 // pred_check
          %p307 = pneg %p42
        $region14: #{encoder_forward.1} parent=11 // pred_check_branch
          %309 = sbr.rel (%p307) target = $region16
        $region15: #{encoder_forward.1} parent=11 // pred_region
          %311 = vsyncadd [#allocation3], 0
          %s312 = sshll.u32 %s0, 4
          %s313 = int_to_ptr.hbm [resolvable:$true] %s312
          %s314 = sshll.u32 [#allocation2], 4
          %s315 = int_to_ptr.vmem [resolvable:$true] %s314
          %320 = dma.hbm_to_vmem [thread:$0]  %s313, 256, %s315, [#allocation3], 128, 128, 8
        $region16: #{encoder_forward.1} parent=11 // pred_fallthru
          _
        // Predicated region
        $region17: #{encoder_forward.1} parent=11 // pred_check
          %p321 = pneg %p63
        $region18: #{encoder_forward.1} parent=11 // pred_check_branch
          %323 = sbr.rel (%p321) target = $region20
        $region19: #{encoder_forward.1} parent=11 // pred_region
          _
        $region20: #{encoder_forward.1} parent=11 // pred_fallthru
          _
      $region12: #{encoder_forward.1} parent=5 // pred_fallthru
        _
      %p324 = scmp.lt.s32.totalorder %s21, 2
      // Predicated region
      $region21: #{encoder_forward.1} parent=5 // pred_check
        %p325 = pneg %p324
      $region22: #{encoder_forward.1} parent=5 // pred_check_branch
        %327 = sbr.rel (%p325) target = $region24
      $region23: #{encoder_forward.1} parent=5 // pred_region
        // Predicated region
        $region25: #{encoder_forward.1} parent=23 // pred_check
          %p328 = pneg %p83
        $region26: #{encoder_forward.1} parent=23 // pred_check_branch
          %330 = sbr.rel (%p328) target = $region28
        $region27: #{encoder_forward.1} parent=23 // pred_region
          %p331 = scmp.lt.s32.totalorder %s21, 1
          %s332 = scalar_select %p331, %s21, 1
          %s333 = smul.addr %s332, 4
          %s334 = smul.addr %s333, 8
          %s335 = scalar_lea.vmem %s2, %s334
        $region28: #{encoder_forward.1} parent=23 // pred_fallthru
          _
        // Predicated region
        $region29: #{encoder_forward.1} parent=23 // pred_check
          %p336 = pneg %p109
        $region30: #{encoder_forward.1} parent=23 // pred_check_branch
          %338 = sbr.rel (%p336) target = $region32
        $region31: #{encoder_forward.1} parent=23 // pred_region
          %p339 = scmp.lt.s32.totalorder %s21, 1
          %s340 = scalar_select %p339, %s21, 1
          %s341 = smul.addr %s340, 4
          %s342 = smul.addr %s341, 8
          %s343 = scalar_lea.vmem %s3, %s342
        $region32: #{encoder_forward.1} parent=23 // pred_fallthru
          _
        // Predicated region
        $region33: #{encoder_forward.1} parent=23 // pred_check
          %p344 = pneg %p135
        $region34: #{encoder_forward.1} parent=23 // pred_check_branch
          %346 = sbr.rel (%p344) target = $region36
        $region35: #{encoder_forward.1} parent=23 // pred_region
          %p347 = scmp.lt.s32.totalorder %s21, 1
          %s348 = scalar_select %p347, %s21, 1
          %s349 = smul.addr %s348, 4
          %s350 = smul.addr %s349, 8
          %s351 = scalar_lea.vmem %s4, %s350
        $region36: #{encoder_forward.1} parent=23 // pred_fallthru
          _
        // Predicated region
        $region37: #{encoder_forward.1} parent=23 // pred_check
          %p352 = pneg %p161
        $region38: #{encoder_forward.1} parent=23 // pred_check_branch
          %354 = sbr.rel (%p352) target = $region40
        $region39: #{encoder_forward.1} parent=23 // pred_region
          %s355 = sand.u32 %s21, 1
          %s356 = scalar_lea.sflag [#allocation6], %s355
          %s357 = sand.u32 %s151, 1
          %s358 = smul.addr %s357, 32
          %s359 = scalar_lea.vmem [#allocation5], %s358
          %361 = vsyncadd %s356, 0
          %s362 = smul.addr %s21, 4
          %s363 = smul.addr %s362, 8
          %s364 = scalar_lea.hbm %s5, %s363
          %s365 = sshll.u32 %s364, 4
          %s366 = int_to_ptr.hbm [resolvable:$true] %s365
          %s367 = sshll.u32 %s359, 4
          %s368 = int_to_ptr.vmem [resolvable:$true] %s367
          %373 = dma.hbm_to_vmem [thread:$0]  %s366, 512, %s368, %s356, 128, 128, 8
        $region40: #{encoder_forward.1} parent=23 // pred_fallthru
          _
        // Predicated region
        $region41: #{encoder_forward.1} parent=23 // pred_check
          %p374 = pneg %p187
        $region42: #{encoder_forward.1} parent=23 // pred_check_branch
          %376 = sbr.rel (%p374) target = $region44
        $region43: #{encoder_forward.1} parent=23 // pred_region
          %s377 = sand.u32 %s21, 1
          %s378 = scalar_lea.sflag [#allocation6], %s377
          %s379 = sand.u32 %s177, 1
          %s380 = smul.addr %s379, 32
          %s381 = scalar_lea.vmem [#allocation7], %s380
          %383 = vsyncadd %s378, 0
          %s384 = smul.addr %s21, 4
          %s385 = smul.addr %s384, 8
          %s386 = scalar_lea.hbm %s6, %s385
          %s387 = sshll.u32 %s386, 4
          %s388 = int_to_ptr.hbm [resolvable:$true] %s387
          %s389 = sshll.u32 %s381, 4
          %s390 = int_to_ptr.vmem [resolvable:$true] %s389
          %395 = dma.hbm_to_vmem [thread:$0]  %s388, 512, %s390, %s378, 128, 128, 8
        $region44: #{encoder_forward.1} parent=23 // pred_fallthru
          _
        // Predicated region
        $region45: #{encoder_forward.1} parent=23 // pred_check
          %p396 = pneg %p213
        $region46: #{encoder_forward.1} parent=23 // pred_check_branch
          %398 = sbr.rel (%p396) target = $region48
        $region47: #{encoder_forward.1} parent=23 // pred_region
          %p399 = scmp.lt.s32.totalorder %s21, 1
          %s400 = scalar_select %p399, %s21, 1
          %s401 = scalar_lea.vmem %s7, %s400
        $region48: #{encoder_forward.1} parent=23 // pred_fallthru
          _
        // Predicated region
        $region49: #{encoder_forward.1} parent=23 // pred_check
          %p402 = pneg %p239
        $region50: #{encoder_forward.1} parent=23 // pred_check_branch
          %404 = sbr.rel (%p402) target = $region52
        $region51: #{encoder_forward.1} parent=23 // pred_region
          %p405 = scmp.lt.s32.totalorder %s21, 1
          %s406 = scalar_select %p405, %s21, 1
          %s407 = smul.addr %s406, 8
          %s408 = smul.addr %s407, 8
          %s409 = scalar_lea.vmem %s8, %s408
        $region52: #{encoder_forward.1} parent=23 // pred_fallthru
          _
        // Predicated region
        $region53: #{encoder_forward.1} parent=23 // pred_check
          %p410 = pneg %p265
        $region54: #{encoder_forward.1} parent=23 // pred_check_branch
          %412 = sbr.rel (%p410) target = $region56
        $region55: #{encoder_forward.1} parent=23 // pred_region
          %p413 = scmp.lt.s32.totalorder %s21, 1
          %s414 = scalar_select %p413, %s21, 1
          %s415 = smul.addr %s414, 2
          %s416 = smul.addr %s415, 8
          %s417 = scalar_lea.vmem %s9, %s416
        $region56: #{encoder_forward.1} parent=23 // pred_fallthru
          _
      $region24: #{encoder_forward.1} parent=5 // pred_fallthru
        _
      %p418 = scmp.le.s32.totalorder 1, %s21
      %p419 = scmp.lt.s32.totalorder %s21, 3
      %p420 = pnand %p418, %p419
      %p421 = pneg %p420
      // Predicated region
      $region57: #{encoder_forward.1} parent=5 // pred_check
        _
      $region58: #{encoder_forward.1} parent=5 // pred_check_branch
        %423 = sbr.rel (%p420) target = $region60
      $region59: #{encoder_forward.1} parent=5 // pred_region
        %s424 = ssub.s32 %s21, 1
        // Predicated region
        $region61: #{encoder_forward.1} parent=59 // pred_check
          %p425 = pneg %p42
        $region62: #{encoder_forward.1} parent=59 // pred_check_branch
          %427 = sbr.rel (%p425) target = $region64
        $region63: #{encoder_forward.1} parent=59 // pred_region
          %429 = dma.done [#allocation3], 256
        $region64: #{encoder_forward.1} parent=59 // pred_fallthru
          _
        %s430 = sand.u32 %s26, 1
        %s431 = scalar_lea.sflag [#allocation6], %s430
        %s432 = sand.u32 %s154, 1
        %s433 = smul.addr %s432, 32
        %s434 = scalar_lea.vmem [#allocation5], %s433
        // Predicated region
        $region65: #{encoder_forward.1} parent=59 // pred_check
          %p435 = pneg %p167
        $region66: #{encoder_forward.1} parent=59 // pred_check_branch
          %437 = sbr.rel (%p435) target = $region68
        $region67: #{encoder_forward.1} parent=59 // pred_region
          %439 = dma.done %s431, 512
        $region68: #{encoder_forward.1} parent=59 // pred_fallthru
          _
        %s440 = sand.u32 %s26, 1
        %s441 = scalar_lea.sflag [#allocation6], %s440
        %s442 = sand.u32 %s180, 1
        %s443 = smul.addr %s442, 32
        %s444 = scalar_lea.vmem [#allocation7], %s443
        // Predicated region
        $region69: #{encoder_forward.1} parent=59 // pred_check
          %p445 = pneg %p193
        $region70: #{encoder_forward.1} parent=59 // pred_check_branch
          %447 = sbr.rel (%p445) target = $region72
        $region71: #{encoder_forward.1} parent=59 // pred_region
          %449 = dma.done %s441, 512
        $region72: #{encoder_forward.1} parent=59 // pred_fallthru
          _
        %p450 = pneg %p42
        %p451 = pneg %p39
        %p452 = pneg %p63
        %p453 = pneg %p60
        %p454 = scmp.lt.s32.totalorder %s26, 1
        %s455 = scalar_select %p454, %s26, 1
        %s456 = smul.addr %s455, 4
        %s457 = smul.addr %s456, 8
        %s458 = scalar_lea.vmem %s2, %s457
        %p459 = pneg %p89
        %p460 = pneg %p86
        %p461 = scmp.lt.s32.totalorder %s26, 1
        %s462 = scalar_select %p461, %s26, 1
        %s463 = smul.addr %s462, 4
        %s464 = smul.addr %s463, 8
        %s465 = scalar_lea.vmem %s3, %s464
        %p466 = pneg %p115
        %p467 = pneg %p112
        %p468 = scmp.lt.s32.totalorder %s26, 1
        %s469 = scalar_select %p468, %s26, 1
        %s470 = smul.addr %s469, 4
        %s471 = smul.addr %s470, 8
        %s472 = scalar_lea.vmem %s4, %s471
        %p473 = pneg %p141
        %p474 = pneg %p138
        %s475 = sand.u32 %s26, 1
        %s476 = scalar_lea.sflag [#allocation6], %s475
        %s477 = sand.u32 %s154, 1
        %s478 = smul.addr %s477, 32
        %s479 = scalar_lea.vmem [#allocation5], %s478
        %p480 = pneg %p167
        %p481 = pneg %p164
        %s482 = sand.u32 %s26, 1
        %s483 = scalar_lea.sflag [#allocation6], %s482
        %s484 = sand.u32 %s180, 1
        %s485 = smul.addr %s484, 32
        %s486 = scalar_lea.vmem [#allocation7], %s485
        %p487 = pneg %p193
        %p488 = pneg %p190
        %p489 = scmp.lt.s32.totalorder %s26, 1
        %s490 = scalar_select %p489, %s26, 1
        %s491 = scalar_lea.vmem %s7, %s490
        %p492 = pneg %p219
        %p493 = pneg %p216
        %p494 = scmp.lt.s32.totalorder %s26, 1
        %s495 = scalar_select %p494, %s26, 1
        %s496 = smul.addr %s495, 8
        %s497 = smul.addr %s496, 8
        %s498 = scalar_lea.vmem %s8, %s497
        %p499 = pneg %p245
        %p500 = pneg %p242
        %p501 = scmp.lt.s32.totalorder %s26, 1
        %s502 = scalar_select %p501, %s26, 1
        %s503 = smul.addr %s502, 2
        %s504 = smul.addr %s503, 8
        %s505 = scalar_lea.vmem %s9, %s504
        %p506 = pneg %p271
        %p507 = pneg %p268
        %p508 = pneg %p292
        %p509 = pneg %p289
        %p510 = scmp.lt.s32.totalorder %s26, 1
        %s511 = scalar_select %p510, %s26, 1
        %s512 = smul.addr %s511, 4
        %s513 = smul.addr %s512, 8
        %s514 = scalar_lea.vmem %s2, %s513
        %p515 = scmp.lt.s32.totalorder %s26, 1
        %s516 = scalar_select %p515, %s26, 1
        %s517 = smul.addr %s516, 4
        %s518 = smul.addr %s517, 8
        %s519 = scalar_lea.vmem %s3, %s518
        %p520 = scmp.lt.s32.totalorder %s26, 1
        %s521 = scalar_select %p520, %s26, 1
        %s522 = smul.addr %s521, 4
        %s523 = smul.addr %s522, 8
        %s524 = scalar_lea.vmem %s4, %s523
        %p525 = scmp.lt.s32.totalorder %s26, 1
        %s526 = scalar_select %p525, %s26, 1
        %s527 = scalar_lea.vmem %s7, %s526
        %p528 = scmp.lt.s32.totalorder %s26, 1
        %s529 = scalar_select %p528, %s26, 1
        %s530 = smul.addr %s529, 8
        %s531 = smul.addr %s530, 8
        %s532 = scalar_lea.vmem %s8, %s531
        %p533 = scmp.lt.s32.totalorder %s26, 1
        %s534 = scalar_select %p533, %s26, 1
        %s535 = smul.addr %s534, 2
        %s536 = smul.addr %s535, 8
        %s537 = scalar_lea.vmem %s9, %s536
        %p538 = scmp.eq.s32.totalorder %s26, 0
        // Predicated region
        $region73: #{encoder_forward.1} parent=59 // pred_check
          %p539 = pneg %p538
        $region74: #{encoder_forward.1} parent=59 // pred_check_branch
          %541 = sbr.rel (%p539) target = $region76
        $region75: #{encoder_forward.1} parent=59 // pred_region
          %v542 = vld [vmem:[#allocation2] sm:$0xff]
          %v543 = vld [vmem:[#allocation2 + $0x8] sm:$0xff]
          %vm544 = vcmask 261120
          %545 = vst.msk [vmem:[#allocation8] sm:$0xff] %vm544, %v542
          %546 = vst.msk [vmem:[#allocation8 + $0x8] sm:$0xff] %vm544, %v543
        $region76: #{encoder_forward.1} parent=59 // pred_fallthru
          _
        %v547 = vld [vmem:[%s537] sm:$0xff]
        %v548 = vld [vmem:[%s537 + $0x8] sm:$0x1]
        %v549 = vld [vmem:[#allocation8] sm:$0xff]
        %v550 = vld [vmem:[#allocation8 + $0x8] sm:$0xff]
        %v551 = vld [vmem:[%s514] sm:$0xff]
        %v552 = vld [vmem:[%s514 + $0x8] sm:$0xff]
        %v553 = vld [vmem:[%s514 + $0x10] sm:$0xff]
        %v554 = vld [vmem:[%s514 + $0x18] sm:$0xff]
        %v555 = vperm.slane %v547, 0
        %vm556 = vcmask 261120
        %v558 = vsel %vm556, %v549, 0
        %v561 = vsel %vm556, %v550, 0
        %563 = vmatpush.msra.mxu0 0.0
        %564 = vmatpush.msra.mxu0 0.0
        %565 = vmatpush.msra.mxu0 0.0
        %566 = vmatpush.msra.mxu0 0.0
        %567 = vmatpush.msra.mxu0 0.0
        %568 = vmatpush.msra.mxu0 0.0
        %569 = vmatpush.msra.mxu0 0.0
        %570 = vmatpush.msra.mxu0 0.0
        %571 = vmatpush.msra.mxu0 0.0
        %572 = vmatpush.msra.mxu0 0.0
        %573 = vmatpush.msra.mxu0 0.0
        %574 = vmatpush.msra.mxu0 0.0
        %575 = vmatpush.msra.mxu0 %v554
        %576 = vmatpush.msra.mxu0 %v553
        %577 = vmatpush.msra.mxu0 %v552
        %578 = vmatpush.msra.mxu0 %v551
        %579 = vmatmul.f32.gmra.mxu0 %v558
        %v580 = vpop.f32.mrf.mxu0
        %v581 = vadd.f32 %v555, %v580
        %582 = vmatmul.f32.gmra.mxu0 %v561
        %v583 = vpop.f32.mrf.mxu0
        %v584 = vadd.f32 %v555, %v583
        %585 = vdwg.mxu0
        %v586 = vld [vmem:[%s519] sm:$0xff]
        %v587 = vld [vmem:[%s519 + $0x8] sm:$0xff]
        %v588 = vld [vmem:[%s519 + $0x10] sm:$0xff]
        %v589 = vld [vmem:[%s519 + $0x18] sm:$0xff]
        %v590 = vperm.slane %v547, 1
        %591 = vmatpush.msra.mxu0 0.0
        %592 = vmatpush.msra.mxu0 0.0
        %593 = vmatpush.msra.mxu0 0.0
        %594 = vmatpush.msra.mxu0 0.0
        %595 = vmatpush.msra.mxu0 0.0
        %596 = vmatpush.msra.mxu0 0.0
        %597 = vmatpush.msra.mxu0 0.0
        %598 = vmatpush.msra.mxu0 0.0
        %599 = vmatpush.msra.mxu0 0.0
        %600 = vmatpush.msra.mxu0 0.0
        %601 = vmatpush.msra.mxu0 0.0
        %602 = vmatpush.msra.mxu0 0.0
        %603 = vmatpush.msra.mxu0 %v589
        %604 = vmatpush.msra.mxu0 %v588
        %605 = vmatpush.msra.mxu0 %v587
        %606 = vmatpush.msra.mxu0 %v586
        %607 = vmatmul.f32.gmra.mxu0 %v558
        %v608 = vpop.f32.mrf.mxu0
        %v609 = vadd.f32 %v590, %v608
        %610 = vmatmul.f32.gmra.mxu0 %v561
        %v611 = vpop.f32.mrf.mxu0
        %v612 = vadd.f32 %v590, %v611
        %613 = vdwg.mxu0
        %v614 = vld [vmem:[%s524] sm:$0xff]
        %v615 = vld [vmem:[%s524 + $0x8] sm:$0xff]
        %v616 = vld [vmem:[%s524 + $0x10] sm:$0xff]
        %v617 = vld [vmem:[%s524 + $0x18] sm:$0xff]
        %v618 = vperm.slane %v547, 2
        %619 = vmatpush.msra.mxu0 0.0
        %620 = vmatpush.msra.mxu0 0.0
        %621 = vmatpush.msra.mxu0 0.0
        %622 = vmatpush.msra.mxu0 0.0
        %623 = vmatpush.msra.mxu0 0.0
        %624 = vmatpush.msra.mxu0 0.0
        %625 = vmatpush.msra.mxu0 0.0
        %626 = vmatpush.msra.mxu0 0.0
        %627 = vmatpush.msra.mxu0 0.0
        %628 = vmatpush.msra.mxu0 0.0
        %629 = vmatpush.msra.mxu0 0.0
        %630 = vmatpush.msra.mxu0 0.0
        %631 = vmatpush.msra.mxu0 %v617
        %632 = vmatpush.msra.mxu0 %v616
        %633 = vmatpush.msra.mxu0 %v615
        %634 = vmatpush.msra.mxu0 %v614
        %635 = vmatmul.f32.gmra.mxu0 %v558
        %v636 = vpop.f32.mrf.mxu0
        %v637 = vadd.f32 %v618, %v636
        %638 = vmatmul.f32.gmra.mxu0 %v561
        %v639 = vpop.f32.mrf.mxu0
        %v640 = vadd.f32 %v618, %v639
        %641 = vdwg.mxu0
        %644 = vrot.lane.b32.xlu0 %v581, 120
        %v645 = vpop.permute.xlu0 %644
        %646 = vrot.lane.b32.xlu0 %v584, 120
        %v647 = vpop.permute.xlu0 %646
        %648 = vrot.lane.b32.xlu0 %v581, 112
        %v649 = vpop.permute.xlu0 %648
        %650 = vrot.lane.b32.xlu0 %v584, 112
        %v651 = vpop.permute.xlu0 %650
        %652 = vrot.lane.b32.xlu0 %v581, 104
        %v653 = vpop.permute.xlu0 %652
        %654 = vrot.lane.b32.xlu0 %v584, 104
        %v655 = vpop.permute.xlu0 %654
        %658 = vrot.lane.b32.xlu0 %v609, 120
        %v659 = vpop.permute.xlu0 %658
        %660 = vrot.lane.b32.xlu0 %v612, 120
        %v661 = vpop.permute.xlu0 %660
        %662 = vrot.lane.b32.xlu0 %v609, 112
        %v663 = vpop.permute.xlu0 %662
        %664 = vrot.lane.b32.xlu0 %v612, 112
        %v665 = vpop.permute.xlu0 %664
        %666 = vrot.lane.b32.xlu0 %v609, 104
        %v667 = vpop.permute.xlu0 %666
        %668 = vrot.lane.b32.xlu0 %v612, 104
        %v669 = vpop.permute.xlu0 %668
        %672 = vrot.lane.b32.xlu0 %v637, 120
        %v673 = vpop.permute.xlu0 %672
        %674 = vrot.lane.b32.xlu0 %v640, 120
        %v675 = vpop.permute.xlu0 %674
        %678 = vrot.lane.b32.xlu0 %v637, 112
        %v679 = vpop.permute.xlu0 %678
        %680 = vrot.lane.b32.xlu0 %v640, 112
        %v681 = vpop.permute.xlu0 %680
        %684 = vrot.lane.b32.xlu0 %v637, 104
        %v685 = vpop.permute.xlu0 %684
        %686 = vrot.lane.b32.xlu0 %v640, 104
        %v687 = vpop.permute.xlu0 %686
        %vm690 = vcmask 64512
        %v691 = vsel %vm690, %v581, 0
        %v693 = vsel %vm690, %v584, 0
        %v695 = vsel %vm690, %v609, 0
        %v697 = vsel %vm690, %v612, 0
        %699 = vmatpush.xpose.msra.mxu0 0.0
        %700 = vmatpush.xpose.msra.mxu0 0.0
        %701 = vmatpush.xpose.msra.mxu0 0.0
        %702 = vmatpush.xpose.msra.mxu0 0.0
        %703 = vmatpush.xpose.msra.mxu0 0.0
        %704 = vmatpush.xpose.msra.mxu0 0.0
        %705 = vmatpush.xpose.msra.mxu0 0.0
        %706 = vmatpush.xpose.msra.mxu0 0.0
        %707 = vmatpush.xpose.msra.mxu0 0.0
        %708 = vmatpush.xpose.msra.mxu0 0.0
        %709 = vmatpush.xpose.msra.mxu0 0.0
        %710 = vmatpush.xpose.msra.mxu0 0.0
        %711 = vmatpush.xpose.msra.mxu0 0.0
        %712 = vmatpush.xpose.msra.mxu0 0.0
        %713 = vmatpush.xpose.msra.mxu0 %v697
        %714 = vmatpush.xpose.msra.mxu0 %v695
        %715 = vmatmul.f32.gmra.mxu0 %v691
        %v716 = vpop.f32.mrf.mxu0
        %v717 = vadd.f32 0.0, %v716
        %718 = vmatmul.f32.gmra.mxu0 %v693
        %v719 = vpop.f32.mrf.mxu0
        %v720 = vadd.f32 0.0, %v719
        %721 = vdwg.mxu0
        %v722 = vsel %vm690, %v645, 0
        %v724 = vsel %vm690, %v647, 0
        %v726 = vsel %vm690, %v659, 0
        %v728 = vsel %vm690, %v661, 0
        %730 = vmatpush.xpose.msra.mxu0 0.0
        %731 = vmatpush.xpose.msra.mxu0 0.0
        %732 = vmatpush.xpose.msra.mxu0 0.0
        %733 = vmatpush.xpose.msra.mxu0 0.0
        %734 = vmatpush.xpose.msra.mxu0 0.0
        %735 = vmatpush.xpose.msra.mxu0 0.0
        %736 = vmatpush.xpose.msra.mxu0 0.0
        %737 = vmatpush.xpose.msra.mxu0 0.0
        %738 = vmatpush.xpose.msra.mxu0 0.0
        %739 = vmatpush.xpose.msra.mxu0 0.0
        %740 = vmatpush.xpose.msra.mxu0 0.0
        %741 = vmatpush.xpose.msra.mxu0 0.0
        %742 = vmatpush.xpose.msra.mxu0 0.0
        %743 = vmatpush.xpose.msra.mxu0 0.0
        %744 = vmatpush.xpose.msra.mxu0 %v728
        %745 = vmatpush.xpose.msra.mxu0 %v726
        %746 = vmatmul.f32.gmra.mxu0 %v722
        %v747 = vpop.f32.mrf.mxu0
        %v748 = vadd.f32 0.0, %v747
        %749 = vmatmul.f32.gmra.mxu0 %v724
        %v750 = vpop.f32.mrf.mxu0
        %v751 = vadd.f32 0.0, %v750
        %752 = vdwg.mxu0
        %v753 = vsel %vm690, %v649, 0
        %v755 = vsel %vm690, %v651, 0
        %v757 = vsel %vm690, %v663, 0
        %v759 = vsel %vm690, %v665, 0
        %761 = vmatpush.xpose.msra.mxu0 0.0
        %762 = vmatpush.xpose.msra.mxu0 0.0
        %763 = vmatpush.xpose.msra.mxu0 0.0
        %764 = vmatpush.xpose.msra.mxu0 0.0
        %765 = vmatpush.xpose.msra.mxu0 0.0
        %766 = vmatpush.xpose.msra.mxu0 0.0
        %767 = vmatpush.xpose.msra.mxu0 0.0
        %768 = vmatpush.xpose.msra.mxu0 0.0
        %769 = vmatpush.xpose.msra.mxu0 0.0
        %770 = vmatpush.xpose.msra.mxu0 0.0
        %771 = vmatpush.xpose.msra.mxu0 0.0
        %772 = vmatpush.xpose.msra.mxu0 0.0
        %773 = vmatpush.xpose.msra.mxu0 0.0
        %774 = vmatpush.xpose.msra.mxu0 0.0
        %775 = vmatpush.xpose.msra.mxu0 %v759
        %776 = vmatpush.xpose.msra.mxu0 %v757
        %777 = vmatmul.f32.gmra.mxu0 %v753
        %v778 = vpop.f32.mrf.mxu0
        %v779 = vadd.f32 0.0, %v778
        %780 = vmatmul.f32.gmra.mxu0 %v755
        %v781 = vpop.f32.mrf.mxu0
        %v782 = vadd.f32 0.0, %v781
        %783 = vdwg.mxu0
        %v784 = vsel %vm690, %v653, 0
        %v786 = vsel %vm690, %v655, 0
        %v788 = vsel %vm690, %v667, 0
        %v790 = vsel %vm690, %v669, 0
        %792 = vmatpush.xpose.msra.mxu0 0.0
        %793 = vmatpush.xpose.msra.mxu0 0.0
        %794 = vmatpush.xpose.msra.mxu0 0.0
        %795 = vmatpush.xpose.msra.mxu0 0.0
        %796 = vmatpush.xpose.msra.mxu0 0.0
        %797 = vmatpush.xpose.msra.mxu0 0.0
        %798 = vmatpush.xpose.msra.mxu0 0.0
        %799 = vmatpush.xpose.msra.mxu0 0.0
        %800 = vmatpush.xpose.msra.mxu0 0.0
        %801 = vmatpush.xpose.msra.mxu0 0.0
        %802 = vmatpush.xpose.msra.mxu0 0.0
        %803 = vmatpush.xpose.msra.mxu0 0.0
        %804 = vmatpush.xpose.msra.mxu0 0.0
        %805 = vmatpush.xpose.msra.mxu0 0.0
        %806 = vmatpush.xpose.msra.mxu0 %v790
        %807 = vmatpush.xpose.msra.mxu0 %v788
        %808 = vmatmul.f32.gmra.mxu0 %v784
        %v809 = vpop.f32.mrf.mxu0
        %v810 = vadd.f32 0.0, %v809
        %811 = vmatmul.f32.gmra.mxu0 %v786
        %v812 = vpop.f32.mrf.mxu0
        %v813 = vadd.f32 0.0, %v812
        %814 = vdwg.mxu0
        %v815 = vmul.f32 %v717, 0.35355338
        %v816 = vmul.f32 %v720, 0.35355338
        %v817 = vmul.f32 %v748, 0.35355338
        %v818 = vmul.f32 %v751, 0.35355338
        %v819 = vmul.f32 %v779, 0.35355338
        %v820 = vmul.f32 %v782, 0.35355338
        %v821 = vmul.f32 %v810, 0.35355338
        %v822 = vmul.f32 %v813, 0.35355338
        %v823 = vld [vmem:[%s1] sm:$0xff]
        %v824 = vld [vmem:[%s1 + $0x8] sm:$0xff]
        %v825 = vadd.f32 %v815, %v823
        %v826 = vadd.f32 %v816, %v824
        %v827 = vadd.f32 %v817, %v823
        %v828 = vadd.f32 %v818, %v824
        %v829 = vadd.f32 %v819, %v823
        %v830 = vadd.f32 %v820, %v824
        %v831 = vadd.f32 %v821, %v823
        %v832 = vadd.f32 %v822, %v824
        %vm833 = vcmask 130048
        %v834 = vsel %vm833, %v825, -inf
        %835 = vmax.xlane.f32.xlu0 %v834
        %v836 = vpop.xlane.xlu0 %835
        %v837 = vsel %vm833, %v826, -inf
        %838 = vmax.xlane.f32.xlu0 %v837
        %v839 = vpop.xlane.xlu0 %838
        %v840 = vsel %vm833, %v827, -inf
        %841 = vmax.xlane.f32.xlu0 %v840
        %v842 = vpop.xlane.xlu0 %841
        %v843 = vsel %vm833, %v828, -inf
        %844 = vmax.xlane.f32.xlu0 %v843
        %v845 = vpop.xlane.xlu0 %844
        %v846 = vsel %vm833, %v829, -inf
        %847 = vmax.xlane.f32.xlu0 %v846
        %v848 = vpop.xlane.xlu0 %847
        %v849 = vsel %vm833, %v830, -inf
        %850 = vmax.xlane.f32.xlu0 %v849
        %v851 = vpop.xlane.xlu0 %850
        %v852 = vsel %vm833, %v831, -inf
        %853 = vmax.xlane.f32.xlu0 %v852
        %v854 = vpop.xlane.xlu0 %853
        %v855 = vsel %vm833, %v832, -inf
        %856 = vmax.xlane.f32.xlu0 %v855
        %v857 = vpop.xlane.xlu0 %856
        %v858 = vsub.f32 %v825, %v836
        %v859 = vsub.f32 %v826, %v839
        %v860 = vsub.f32 %v827, %v842
        %v861 = vsub.f32 %v828, %v845
        %v862 = vsub.f32 %v829, %v848
        %v863 = vsub.f32 %v830, %v851
        %v864 = vsub.f32 %v831, %v854
        %v865 = vsub.f32 %v832, %v857
        %v866 = vmul.f32 %v858, 1.442695
        %v867 = vpow.pop %v866
        %v868 = vmul.f32 %v859, 1.442695
        %v869 = vpow.pop %v868
        %v870 = vmul.f32 %v860, 1.442695
        %v871 = vpow.pop %v870
        %v872 = vmul.f32 %v861, 1.442695
        %v873 = vpow.pop %v872
        %v874 = vmul.f32 %v862, 1.442695
        %v875 = vpow.pop %v874
        %v876 = vmul.f32 %v863, 1.442695
        %v877 = vpow.pop %v876
        %v878 = vmul.f32 %v864, 1.442695
        %v879 = vpow.pop %v878
        %v880 = vmul.f32 %v865, 1.442695
        %v881 = vpow.pop %v880
        %v882 = vsel %vm833, %v867, 0.0
        %883 = vadd.xlane.f32.xlu0 %v882
        %v884 = vpop.xlane.xlu0 %883
        %v885 = vsel %vm833, %v869, 0.0
        %886 = vadd.xlane.f32.xlu0 %v885
        %v887 = vpop.xlane.xlu0 %886
        %v888 = vsel %vm833, %v871, 0.0
        %889 = vadd.xlane.f32.xlu0 %v888
        %v890 = vpop.xlane.xlu0 %889
        %v891 = vsel %vm833, %v873, 0.0
        %892 = vadd.xlane.f32.xlu0 %v891
        %v893 = vpop.xlane.xlu0 %892
        %v894 = vsel %vm833, %v875, 0.0
        %895 = vadd.xlane.f32.xlu0 %v894
        %v896 = vpop.xlane.xlu0 %895
        %v897 = vsel %vm833, %v877, 0.0
        %898 = vadd.xlane.f32.xlu0 %v897
        %v899 = vpop.xlane.xlu0 %898
        %v900 = vsel %vm833, %v879, 0.0
        %901 = vadd.xlane.f32.xlu0 %v900
        %v902 = vpop.xlane.xlu0 %901
        %v903 = vsel %vm833, %v881, 0.0
        %904 = vadd.xlane.f32.xlu0 %v903
        %v905 = vpop.xlane.xlu0 %904
        %v906 = vrcp.pop %v884
        %v907 = vrcp.pop %v887
        %v908 = vrcp.pop %v890
        %v909 = vrcp.pop %v893
        %v910 = vrcp.pop %v896
        %v911 = vrcp.pop %v899
        %v912 = vrcp.pop %v902
        %v913 = vrcp.pop %v905
        %v914 = vmul.f32 %v884, %v906
        %v915 = vmul.f32 %v887, %v907
        %v916 = vmul.f32 %v890, %v908
        %v917 = vmul.f32 %v893, %v909
        %v918 = vmul.f32 %v896, %v910
        %v919 = vmul.f32 %v899, %v911
        %v920 = vmul.f32 %v902, %v912
        %v921 = vmul.f32 %v905, %v913
        %v922 = vsub.f32 2.0, %v914
        %v923 = vsub.f32 2.0, %v915
        %v924 = vsub.f32 2.0, %v916
        %v925 = vsub.f32 2.0, %v917
        %v926 = vsub.f32 2.0, %v918
        %v927 = vsub.f32 2.0, %v919
        %v928 = vsub.f32 2.0, %v920
        %v929 = vsub.f32 2.0, %v921
        %v930 = vmul.f32 %v906, %v922
        %v931 = vmul.f32 %v907, %v923
        %v932 = vmul.f32 %v908, %v924
        %v933 = vmul.f32 %v909, %v925
        %v934 = vmul.f32 %v910, %v926
        %v935 = vmul.f32 %v911, %v927
        %v936 = vmul.f32 %v912, %v928
        %v937 = vmul.f32 %v913, %v929
        %v938 = vmul.f32 %v867, %v930
        %v939 = vmul.f32 %v869, %v931
        %v940 = vmul.f32 %v871, %v932
        %v941 = vmul.f32 %v873, %v933
        %v942 = vmul.f32 %v875, %v934
        %v943 = vmul.f32 %v877, %v935
        %v944 = vmul.f32 %v879, %v936
        %v945 = vmul.f32 %v881, %v937
        %v947 = vsel %vm833, %v938, 0
        %v950 = vsel %vm833, %v939, 0
        %952 = vmatpush.msra.mxu0 0.0
        %953 = vmatpush.msra.mxu0 0.0
        %954 = vmatpush.msra.mxu0 0.0
        %955 = vmatpush.msra.mxu0 0.0
        %956 = vmatpush.msra.mxu0 0.0
        %957 = vmatpush.msra.mxu0 0.0
        %958 = vmatpush.msra.mxu0 0.0
        %959 = vmatpush.msra.mxu0 0.0
        %960 = vmatpush.msra.mxu0 0.0
        %961 = vmatpush.msra.mxu0 0.0
        %962 = vmatpush.msra.mxu0 0.0
        %963 = vmatpush.msra.mxu0 0.0
        %964 = vmatpush.msra.mxu0 0.0
        %965 = vmatpush.msra.mxu0 0.0
        %966 = vmatpush.msra.mxu0 %v640
        %967 = vmatpush.msra.mxu0 %v637
        %968 = vmatmul.f32.gmra.mxu0 %v947
        %v969 = vpop.f32.mrf.mxu0
        %v970 = vadd.f32 0.0, %v969
        %971 = vmatmul.f32.gmra.mxu0 %v950
        %v972 = vpop.f32.mrf.mxu0
        %v973 = vadd.f32 0.0, %v972
        %974 = vdwg.mxu0
        %v976 = vsel %vm833, %v940, 0
        %v979 = vsel %vm833, %v941, 0
        %981 = vmatpush.msra.mxu0 0.0
        %982 = vmatpush.msra.mxu0 0.0
        %983 = vmatpush.msra.mxu0 0.0
        %984 = vmatpush.msra.mxu0 0.0
        %985 = vmatpush.msra.mxu0 0.0
        %986 = vmatpush.msra.mxu0 0.0
        %987 = vmatpush.msra.mxu0 0.0
        %988 = vmatpush.msra.mxu0 0.0
        %989 = vmatpush.msra.mxu0 0.0
        %990 = vmatpush.msra.mxu0 0.0
        %991 = vmatpush.msra.mxu0 0.0
        %992 = vmatpush.msra.mxu0 0.0
        %993 = vmatpush.msra.mxu0 0.0
        %994 = vmatpush.msra.mxu0 0.0
        %995 = vmatpush.msra.mxu0 %v675
        %996 = vmatpush.msra.mxu0 %v673
        %997 = vmatmul.f32.gmra.mxu0 %v976
        %v998 = vpop.f32.mrf.mxu0
        %v999 = vadd.f32 0.0, %v998
        %1000 = vmatmul.f32.gmra.mxu0 %v979
        %v1001 = vpop.f32.mrf.mxu0
        %v1002 = vadd.f32 0.0, %v1001
        %1003 = vdwg.mxu0
        %v1005 = vsel %vm833, %v942, 0
        %v1008 = vsel %vm833, %v943, 0
        %1010 = vmatpush.msra.mxu0 0.0
        %1011 = vmatpush.msra.mxu0 0.0
        %1012 = vmatpush.msra.mxu0 0.0
        %1013 = vmatpush.msra.mxu0 0.0
        %1014 = vmatpush.msra.mxu0 0.0
        %1015 = vmatpush.msra.mxu0 0.0
        %1016 = vmatpush.msra.mxu0 0.0
        %1017 = vmatpush.msra.mxu0 0.0
        %1018 = vmatpush.msra.mxu0 0.0
        %1019 = vmatpush.msra.mxu0 0.0
        %1020 = vmatpush.msra.mxu0 0.0
        %1021 = vmatpush.msra.mxu0 0.0
        %1022 = vmatpush.msra.mxu0 0.0
        %1023 = vmatpush.msra.mxu0 0.0
        %1024 = vmatpush.msra.mxu0 %v681
        %1025 = vmatpush.msra.mxu0 %v679
        %1026 = vmatmul.f32.gmra.mxu0 %v1005
        %v1027 = vpop.f32.mrf.mxu0
        %v1028 = vadd.f32 0.0, %v1027
        %1029 = vmatmul.f32.gmra.mxu0 %v1008
        %v1030 = vpop.f32.mrf.mxu0
        %v1031 = vadd.f32 0.0, %v1030
        %1032 = vdwg.mxu0
        %v1034 = vsel %vm833, %v944, 0
        %v1037 = vsel %vm833, %v945, 0
        %1039 = vmatpush.msra.mxu0 0.0
        %1040 = vmatpush.msra.mxu0 0.0
        %1041 = vmatpush.msra.mxu0 0.0
        %1042 = vmatpush.msra.mxu0 0.0
        %1043 = vmatpush.msra.mxu0 0.0
        %1044 = vmatpush.msra.mxu0 0.0
        %1045 = vmatpush.msra.mxu0 0.0
        %1046 = vmatpush.msra.mxu0 0.0
        %1047 = vmatpush.msra.mxu0 0.0
        %1048 = vmatpush.msra.mxu0 0.0
        %1049 = vmatpush.msra.mxu0 0.0
        %1050 = vmatpush.msra.mxu0 0.0
        %1051 = vmatpush.msra.mxu0 0.0
        %1052 = vmatpush.msra.mxu0 0.0
        %1053 = vmatpush.msra.mxu0 %v687
        %1054 = vmatpush.msra.mxu0 %v685
        %1055 = vmatmul.f32.gmra.mxu0 %v1034
        %v1056 = vpop.f32.mrf.mxu0
        %v1057 = vadd.f32 0.0, %v1056
        %1058 = vmatmul.f32.gmra.mxu0 %v1037
        %v1059 = vpop.f32.mrf.mxu0
        %v1060 = vadd.f32 0.0, %v1059
        %1061 = vdwg.mxu0
        %1064 = vrot.lane.b32.xlu0 %v999, 8
        %v1065 = vpop.permute.xlu0 %1064
        %1066 = vrot.lane.b32.xlu0 %v1002, 8
        %v1067 = vpop.permute.xlu0 %1066
        %1072 = vrot.lane.b32.xlu0 %v1028, 16
        %v1073 = vpop.permute.xlu0 %1072
        %1074 = vrot.lane.b32.xlu0 %v1031, 16
        %v1075 = vpop.permute.xlu0 %1074
        %1080 = vrot.lane.b32.xlu0 %v1057, 24
        %v1081 = vpop.permute.xlu0 %1080
        %1082 = vrot.lane.b32.xlu0 %v1060, 24
        %v1083 = vpop.permute.xlu0 %1082
        %v1086 = vsel %vm690, %v970, %v1065
        %v1087 = vsel %vm690, %v973, %v1067
        %v1088 = vsel %vm833, %v1086, %v1073
        %v1089 = vsel %vm833, %v1087, %v1075
        %vm1090 = vcmask 195584
        %v1091 = vsel %vm1090, %v1088, %v1081
        %v1092 = vsel %vm1090, %v1089, %v1083
        %v1093 = vld [vmem:[%s434] sm:$0xff]
        %v1094 = vld [vmem:[%s434 + $0x8] sm:$0xff]
        %v1095 = vld [vmem:[%s434 + $0x10] sm:$0xff]
        %v1096 = vld [vmem:[%s434 + $0x18] sm:$0xff]
        %v1097 = vperm.slane %v547, 3
        %v1099 = vsel %vm556, %v1091, 0
        %v1102 = vsel %vm556, %v1092, 0
        %1104 = vmatpush.msra.mxu0 0.0
        %1105 = vmatpush.msra.mxu0 0.0
        %1106 = vmatpush.msra.mxu0 0.0
        %1107 = vmatpush.msra.mxu0 0.0
        %1108 = vmatpush.msra.mxu0 0.0
        %1109 = vmatpush.msra.mxu0 0.0
        %1110 = vmatpush.msra.mxu0 0.0
        %1111 = vmatpush.msra.mxu0 0.0
        %1112 = vmatpush.msra.mxu0 0.0
        %1113 = vmatpush.msra.mxu0 0.0
        %1114 = vmatpush.msra.mxu0 0.0
        %1115 = vmatpush.msra.mxu0 0.0
        %1116 = vmatpush.msra.mxu0 %v1096
        %1117 = vmatpush.msra.mxu0 %v1095
        %1118 = vmatpush.msra.mxu0 %v1094
        %1119 = vmatpush.msra.mxu0 %v1093
        %1120 = vmatmul.f32.gmra.mxu0 %v1099
        %v1121 = vpop.f32.mrf.mxu0
        %v1122 = vadd.f32 %v1097, %v1121
        %1123 = vmatmul.f32.gmra.mxu0 %v1102
        %v1124 = vpop.f32.mrf.mxu0
        %v1125 = vadd.f32 %v1097, %v1124
        %1126 = vdwg.mxu0
        %v1127 = vadd.f32 %v549, %v1122
        %v1128 = vadd.f32 %v550, %v1125
        %v1129 = vsel %vm556, %v1127, 0.0
        %1130 = vadd.xlane.f32.xlu0 %v1129
        %v1131 = vpop.xlane.xlu0 %1130
        %v1132 = vsel %vm556, %v1128, 0.0
        %1133 = vadd.xlane.f32.xlu0 %v1132
        %v1134 = vpop.xlane.xlu0 %1133
        %v1135 = vrcp.pop 32.0
        %v1136 = vmul.f32 32.0, %v1135
        %v1137 = vsub.f32 1.0, %v1136
        %v1138 = vmul.f32 %v1135, %v1137
        %v1139 = vadd.f32 %v1135, %v1138
        %vm1140 = vweird.f32 %v1135
        %v1141 = vsel %vm1140, %v1135, %v1139
        %v1142 = vmul.f32 %v1131, %v1141
        %v1143 = vmul.f32 %v1134, %v1141
        %v1144 = vsub.f32 %v1127, %v1142
        %v1145 = vsub.f32 %v1128, %v1143
        %v1146 = vmul.f32 %v1144, %v1144
        %v1147 = vmul.f32 %v1145, %v1145
        %v1148 = vsel %vm556, %v1146, 0.0
        %1149 = vadd.xlane.f32.xlu0 %v1148
        %v1150 = vpop.xlane.xlu0 %1149
        %v1151 = vsel %vm556, %v1147, 0.0
        %1152 = vadd.xlane.f32.xlu0 %v1151
        %v1153 = vpop.xlane.xlu0 %1152
        %v1154 = vmul.f32 %v1150, %v1141
        %v1155 = vmul.f32 %v1153, %v1141
        %v1156 = vadd.f32 %v1154, 1e-05
        %v1157 = vadd.f32 %v1155, 1e-05
        %v1158 = vrsqrt.pop %v1156
        %v1159 = vmul.f32 %v1158, %v1156
        %v1160 = vmul.f32 %v1159, %v1158
        %v1161 = vmul.f32 0.5, %v1160
        %v1162 = vsub.f32 1.5, %v1161
        %v1163 = vmul.f32 %v1158, %v1162
        %vm1164 = vweird.f32 %v1156
        %vm1165 = vweird.f32 %v1158
        %vm1166 = vmor %vm1164, %vm1165
        %v1167 = vsel %vm1166, %v1158, %v1163
        %v1168 = vrsqrt.pop %v1157
        %v1169 = vmul.f32 %v1168, %v1157
        %v1170 = vmul.f32 %v1169, %v1168
        %v1171 = vmul.f32 0.5, %v1170
        %v1172 = vsub.f32 1.5, %v1171
        %v1173 = vmul.f32 %v1168, %v1172
        %vm1174 = vweird.f32 %v1157
        %vm1175 = vweird.f32 %v1168
        %vm1176 = vmor %vm1174, %vm1175
        %v1177 = vsel %vm1176, %v1168, %v1173
        %v1178 = vmul.f32 %v1144, %v1167
        %v1179 = vmul.f32 %v1145, %v1177
        %v1180 = vperm.slane %v547, 5
        %v1181 = vmul.f32 %v1178, %v1180
        %v1182 = vmul.f32 %v1179, %v1180
        %v1183 = vperm.slane %v547, 6
        %v1184 = vadd.f32 %v1181, %v1183
        %v1185 = vadd.f32 %v1182, %v1183
        %v1186 = vld [vmem:[%s444] sm:$0xff]
        %v1187 = vld [vmem:[%s444 + $0x8] sm:$0xff]
        %v1188 = vld [vmem:[%s444 + $0x10] sm:$0xff]
        %v1189 = vld [vmem:[%s444 + $0x18] sm:$0xff]
        %v1190 = vld [vmem:[%s527] sm:$0x1]
        %v1192 = vperm.slane %v1190, 0
        %v1195 = vsel %vm556, %v1184, 0
        %v1198 = vsel %vm556, %v1185, 0
        %1200 = vmatpush.msra.mxu0 0.0
        %1201 = vmatpush.msra.mxu0 0.0
        %1202 = vmatpush.msra.mxu0 0.0
        %1203 = vmatpush.msra.mxu0 0.0
        %1204 = vmatpush.msra.mxu0 0.0
        %1205 = vmatpush.msra.mxu0 0.0
        %1206 = vmatpush.msra.mxu0 0.0
        %1207 = vmatpush.msra.mxu0 0.0
        %1208 = vmatpush.msra.mxu0 0.0
        %1209 = vmatpush.msra.mxu0 0.0
        %1210 = vmatpush.msra.mxu0 0.0
        %1211 = vmatpush.msra.mxu0 0.0
        %1212 = vmatpush.msra.mxu0 %v1189
        %1213 = vmatpush.msra.mxu0 %v1188
        %1214 = vmatpush.msra.mxu0 %v1187
        %1215 = vmatpush.msra.mxu0 %v1186
        %1216 = vmatmul.f32.gmra.mxu0 %v1195
        %v1217 = vpop.f32.mrf.mxu0
        %v1218 = vadd.f32 %v1192, %v1217
        %1219 = vmatmul.f32.gmra.mxu0 %v1198
        %v1220 = vpop.f32.mrf.mxu0
        %v1221 = vadd.f32 %v1192, %v1220
        %1222 = vdwg.mxu0
        %v1223 = vmax.f32 %v1218, 0.0
        %v1224 = vmax.f32 %v1221, 0.0
        %v1225 = vld [vmem:[%s532] sm:$0xff]
        %v1226 = vld [vmem:[%s532 + $0x8] sm:$0xff]
        %v1227 = vld [vmem:[%s532 + $0x10] sm:$0xff]
        %v1228 = vld [vmem:[%s532 + $0x18] sm:$0xff]
        %v1229 = vld [vmem:[%s532 + $0x20] sm:$0xff]
        %v1230 = vld [vmem:[%s532 + $0x28] sm:$0xff]
        %v1231 = vld [vmem:[%s532 + $0x30] sm:$0xff]
        %v1232 = vld [vmem:[%s532 + $0x38] sm:$0xff]
        %v1233 = vperm.slane %v547, 4
        %vm1234 = vcmask 523264
        %v1236 = vsel %vm1234, %v1223, 0
        %v1239 = vsel %vm1234, %v1224, 0
        %1241 = vmatpush.msra.mxu0 0.0
        %1242 = vmatpush.msra.mxu0 0.0
        %1243 = vmatpush.msra.mxu0 0.0
        %1244 = vmatpush.msra.mxu0 0.0
        %1245 = vmatpush.msra.mxu0 0.0
        %1246 = vmatpush.msra.mxu0 0.0
        %1247 = vmatpush.msra.mxu0 0.0
        %1248 = vmatpush.msra.mxu0 0.0
        %1249 = vmatpush.msra.mxu0 %v1232
        %1250 = vmatpush.msra.mxu0 %v1231
        %1251 = vmatpush.msra.mxu0 %v1230
        %1252 = vmatpush.msra.mxu0 %v1229
        %1253 = vmatpush.msra.mxu0 %v1228
        %1254 = vmatpush.msra.mxu0 %v1227
        %1255 = vmatpush.msra.mxu0 %v1226
        %1256 = vmatpush.msra.mxu0 %v1225
        %1257 = vmatmul.f32.gmra.mxu0 %v1236
        %v1258 = vpop.f32.mrf.mxu0
        %v1259 = vadd.f32 %v1233, %v1258
        %1260 = vmatmul.f32.gmra.mxu0 %v1239
        %v1261 = vpop.f32.mrf.mxu0
        %v1262 = vadd.f32 %v1233, %v1261
        %1263 = vdwg.mxu0
        %v1264 = vadd.f32 %v1184, %v1259
        %v1265 = vadd.f32 %v1185, %v1262
        %v1266 = vsel %vm556, %v1264, 0.0
        %1267 = vadd.xlane.f32.xlu0 %v1266
        %v1268 = vpop.xlane.xlu0 %1267
        %v1269 = vsel %vm556, %v1265, 0.0
        %1270 = vadd.xlane.f32.xlu0 %v1269
        %v1271 = vpop.xlane.xlu0 %1270
        %v1272 = vmul.f32 %v1268, %v1141
        %v1273 = vmul.f32 %v1271, %v1141
        %v1274 = vsub.f32 %v1264, %v1272
        %v1275 = vsub.f32 %v1265, %v1273
        %v1276 = vmul.f32 %v1274, %v1274
        %v1277 = vmul.f32 %v1275, %v1275
        %v1278 = vsel %vm556, %v1276, 0.0
        %1279 = vadd.xlane.f32.xlu0 %v1278
        %v1280 = vpop.xlane.xlu0 %1279
        %v1281 = vsel %vm556, %v1277, 0.0
        %1282 = vadd.xlane.f32.xlu0 %v1281
        %v1283 = vpop.xlane.xlu0 %1282
        %v1284 = vmul.f32 %v1280, %v1141
        %v1285 = vmul.f32 %v1283, %v1141
        %v1286 = vadd.f32 %v1284, 1e-05
        %v1287 = vadd.f32 %v1285, 1e-05
        %v1288 = vrsqrt.pop %v1286
        %v1289 = vmul.f32 %v1288, %v1286
        %v1290 = vmul.f32 %v1289, %v1288
        %v1291 = vmul.f32 0.5, %v1290
        %v1292 = vsub.f32 1.5, %v1291
        %v1293 = vmul.f32 %v1288, %v1292
        %vm1294 = vweird.f32 %v1286
        %vm1295 = vweird.f32 %v1288
        %vm1296 = vmor %vm1294, %vm1295
        %v1297 = vsel %vm1296, %v1288, %v1293
        %v1298 = vrsqrt.pop %v1287
        %v1299 = vmul.f32 %v1298, %v1287
        %v1300 = vmul.f32 %v1299, %v1298
        %v1301 = vmul.f32 0.5, %v1300
        %v1302 = vsub.f32 1.5, %v1301
        %v1303 = vmul.f32 %v1298, %v1302
        %vm1304 = vweird.f32 %v1287
        %vm1305 = vweird.f32 %v1298
        %vm1306 = vmor %vm1304, %vm1305
        %v1307 = vsel %vm1306, %v1298, %v1303
        %v1308 = vmul.f32 %v1274, %v1297
        %v1309 = vmul.f32 %v1275, %v1307
        %v1310 = vperm.slane %v547, 7
        %v1311 = vmul.f32 %v1308, %v1310
        %v1312 = vmul.f32 %v1309, %v1310
        %v1313 = vperm.slane %v548, 0
        %v1314 = vadd.f32 %v1311, %v1313
        %v1315 = vadd.f32 %v1312, %v1313
        %1316 = vst.msk [vmem:[#allocation8] sm:$0xff] %vm556, %v1314
        %1317 = vst.msk [vmem:[#allocation8 + $0x8] sm:$0xff] %vm556, %v1315
        // Predicated region
        $region77: #{encoder_forward.1} parent=59 // pred_check
          %p1318 = pneg %p289
        $region78: #{encoder_forward.1} parent=59 // pred_check_branch
          %1320 = sbr.rel (%p1318) target = $region80
        $region79: #{encoder_forward.1} parent=59 // pred_region
          %1322 = vsyncadd [#allocation4], 0
          %s1323 = sshll.u32 [#allocation8], 4
          %s1324 = int_to_ptr.vmem [resolvable:$true] %s1323
          %s1325 = sshll.u32 %s10, 4
          %s1326 = int_to_ptr.hbm [resolvable:$true] %s1325
          %1331 = dma.vmem_to_hbm [thread:$0]  %s1324, 256, %s1326, [#allocation4], 128, 128, 8
        $region80: #{encoder_forward.1} parent=59 // pred_fallthru
          _
        // Predicated region
        $region81: #{encoder_forward.1} parent=59 // pred_check
          %p1332 = pneg %p289
        $region82: #{encoder_forward.1} parent=59 // pred_check_branch
          %1334 = sbr.rel (%p1332) target = $region84
        $region83: #{encoder_forward.1} parent=59 // pred_region
          %1336 = dma.done [#allocation4], 256
        $region84: #{encoder_forward.1} parent=59 // pred_fallthru
          _
      $region60: #{encoder_forward.1} parent=5 // pred_fallthru
        _
      %p1337 = scmp.le.s32.totalorder 2, %s21
      // Predicated region
      $region85: #{encoder_forward.1} parent=5 // pred_check
        %p1338 = pneg %p1337
      $region86: #{encoder_forward.1} parent=5 // pred_check_branch
        %1340 = sbr.rel (%p1338) target = $region88
      $region87: #{encoder_forward.1} parent=5 // pred_region
        %s1341 = ssub.s32 %s21, 2
      $region88: #{encoder_forward.1} parent=5 // pred_fallthru
        _
    $region6: #{encoder_forward.1} parent=1 // loop_footer
      %s25 = sadd.s32 1, %s21
    $region7: #{encoder_forward.1} parent=1 // loop_footer_branch
      %20 = sbr.rel target = $region3
    $region8: #{encoder_forward.1} parent=1 // loop_exit
      _
    %1342 = vsyncpa [#allocation3], 1
    %s1343 = scalar_lea.sflag [#allocation3], 1
    %1344 = vsyncpa %s1343, 1
    %1345 = vsyncpa [#allocation6], 1
    %s1346 = scalar_lea.sflag [#allocation6], 1
    %1347 = vsyncpa %s1346, 1
    %1348 = vsyncpa [#allocation4], 1
    %s1349 = scalar_lea.sflag [#allocation4], 1
    %1350 = vsyncpa %s1349, 1

</llo_original>
